<compile_context>
chip_gen: v6e
topology: v6e:2x2x1
jax: 0.10.0
libtpu: 0.0.40
codegen_flags: <defaults>
</compile_context>

<pallas_src>
import functools
import math

import jax
import jax.numpy as jnp
from jax import lax
from jax.experimental import pallas as pl
from jax.experimental.pallas import tpu as pltpu

# ---------------- small Llama config (synthetic, lane-dense) ----------------
HIDDEN = 128                  # multiple of 128 -> lane-dense activations
N_HEADS = 4
HEAD_DIM = HIDDEN // N_HEADS  # 32
INTERMEDIATE = 256            # multiple of 128 -> lane-dense gate|up
N_LAYERS = 2
VOCAB = 128
RMS_EPS = 1e-6
ROPE_BASE = 10000.0
CANDIDATE_TOKENS = (10, 12)   # "+" / "-" token ids used by the RLHFlow math RM
POOL_OFFSET = 3               # Pooler(pooling_type=LAST, normalize=False, offset=3)
NEG_INF = -1e30
LANE = 128

_VMEM = pl.BlockSpec(memory_space=pltpu.MemorySpace.VMEM)


# ---------------- in-kernel helpers (traced, f32 element-wise math) ----------------
def _rmsnorm(x, gamma):
    var = jnp.mean(x * x, axis=-1, keepdims=True)
    return x * lax.rsqrt(var + RMS_EPS) * gamma


def _rope_full(x, cos, sin, n_heads, head_dim):
    # x / cos / sin: [S, H]; rotate_half applied per head segment, full lane width.
    half = head_dim // 2
    parts = []
    for h in range(n_heads):
        x1 = x[:, h * head_dim: h * head_dim + half]
        x2 = x[:, h * head_dim + half: (h + 1) * head_dim]
        parts.append(-x2)
        parts.append(x1)
    rot = jnp.concatenate(parts, axis=-1)
    return x * cos + rot * sin


# ---------------- fused backbone kernel: grid = (batch, layer) ----------------
def _backbone_kernel(x_ref, cos_ref, sin_ref, g1_ref, wqkv_ref, wo_ref,
                     g2_ref, wgu_ref, wdn_ref, o_ref, *, n_heads, head_dim, scale):
    layer = pl.program_id(1)

    # Residual stream lives in the revisited output block (same block index for
    # every layer of this batch element) -> stays VMEM-resident across layers.
    @pl.when(layer == 0)
    def _():
        o_ref[...] = x_ref[...]

    x = o_ref[...]                                         # [S, H] f32 residual
    seq, hidden = x.shape

    # ---- attention: RMSNorm -> fused QKV -> RoPE (full width) -> causal attn -> o-proj
    h = _rmsnorm(x, g1_ref[...])
    qkv = jnp.dot(h.astype(jnp.bfloat16), wqkv_ref[...],
                  preferred_element_type=jnp.float32)      # [S, 3H] f32
    cos = cos_ref[...]
    sin = sin_ref[...]
    q = _rope_full(qkv[:, :hidden], cos, sin, n_heads, head_dim)
    k = _rope_full(qkv[:, hidden:2 * hidden], cos, sin, n_heads, head_dim)
    v = qkv[:, 2 * hidden:]

    # heads batched into a leading axis: [nh, S, Dh]
    q3 = jnp.stack([q[:, i * head_dim:(i + 1) * head_dim] for i in range(n_heads)],
                   axis=0).astype(jnp.bfloat16)
    k3 = jnp.stack([k[:, i * head_dim:(i + 1) * head_dim] for i in range(n_heads)],
                   axis=0).astype(jnp.bfloat16)
    v3 = jnp.stack([v[:, i * head_dim:(i + 1) * head_dim] for i in range(n_heads)],
                   axis=0).astype(jnp.bfloat16)

    ri = lax.broadcasted_iota(jnp.int32, (seq, seq), 0)
    ci = lax.broadcasted_iota(jnp.int32, (seq, seq), 1)
    causal = ci <= ri                                      # plain per-sequence mask

    s = jnp.einsum('hqd,hkd->hqk', q3, k3,
                   preferred_element_type=jnp.float32) * scale   # [nh, S, S]
    s = jnp.where(causal[None, :, :], s, NEG_INF)
    m = jnp.max(s, axis=-1, keepdims=True)
    p = jnp.exp(s - m)
    p = p / jnp.sum(p, axis=-1, keepdims=True)             # exact division (numerics)
    o3 = jnp.einsum('hqk,hkd->hqd', p.astype(jnp.bfloat16), v3,
                    preferred_element_type=jnp.float32)    # [nh, S, Dh]
    attn = jnp.concatenate([o3[i] for i in range(n_heads)], axis=-1)   # [S, H]

    x = x + jnp.dot(attn.astype(jnp.bfloat16), wo_ref[...],
                    preferred_element_type=jnp.float32)

    # ---- MLP: RMSNorm -> fused gate|up -> SwiGLU (single tanh) -> down-proj + residual
    h = _rmsnorm(x, g2_ref[...])
    gu = jnp.dot(h.astype(jnp.bfloat16), wgu_ref[...],
                 preferred_element_type=jnp.float32)       # [S, 2I] f32
    inter = wgu_ref.shape[1] // 2
    gate = gu[:, :inter]
    up = gu[:, inter:]
    sig = 0.5 * (jnp.tanh(0.5 * gate) + 1.0)               # sigmoid, one EUP op
    act = gate * sig * up
    o_ref[...] = x + jnp.dot(act.astype(jnp.bfloat16), wdn_ref[...],
                             preferred_element_type=jnp.float32)


def pallas_backbone(x, cos, sin, params):
    B, S, H = x.shape
    L = params["wqkv_t"].shape[0]
    kern = functools.partial(_backbone_kernel, n_heads=N_HEADS, head_dim=HEAD_DIM,
                             scale=1.0 / math.sqrt(HEAD_DIM))

    seq_spec = pl.BlockSpec((None, S, H), lambda b, l: (b, 0, 0))

    def wspec(shape):
        return pl.BlockSpec((None,) + shape, lambda b, l: (l, 0, 0))

    return pl.pallas_call(
        kern,
        grid=(B, L),
        out_shape=jax.ShapeDtypeStruct((B, S, H), jnp.float32),
        in_specs=[seq_spec, seq_spec, seq_spec,
                  wspec((1, H)), wspec((H, 3 * H)), wspec((H, H)),
                  wspec((1, H)), wspec((H, 2 * INTERMEDIATE)), wspec((INTERMEDIATE, H))],
        out_specs=seq_spec,
        compiler_params=pltpu.CompilerParams(
            dimension_semantics=("parallel", "arbitrary")),
    )(x, cos, sin, params["g1"], params["wqkv_t"], params["wo_t"],
      params["g2"], params["wgu_t"], params["wdn_t"])


# ---------------- fused reward-head kernel (pooled row, 2 candidate columns) ----------------
def _head_kernel(xp_ref, g_ref, w_ref, o_ref):
    # xp_ref: [B, H] pooled hidden rows; w_ref: [H, 128] bf16 with the two
    # candidate ("+","-") lm_head columns in lanes 0 and 1 (rest zero-padded).
    h = _rmsnorm(xp_ref[...], g_ref[...])
    logits = jnp.dot(h.astype(jnp.bfloat16), w_ref[...],
                     preferred_element_type=jnp.float32)   # [B, 128] f32
    l_plus = logits[:, 0:1]
    l_minus = logits[:, 1:2]
    m = jnp.maximum(l_plus, l_minus)
    e_plus = jnp.exp(l_plus - m)
    e_minus = jnp.exp(l_minus - m)
    o_ref[...] = e_plus / (e_plus + e_minus)               # prob of "+" (index 0), f32


def pallas_head(xp, gamma, lm_head_cand):
    B, _ = xp.shape
    return pl.pallas_call(
        _head_kernel,
        out_shape=jax.ShapeDtypeStruct((B, 1), jnp.float32),
        in_specs=[_VMEM] * 3,
        out_specs=_VMEM,
    )(xp, gamma, lm_head_cand)


# ---------------- host-side params (PyTorch layout -> stacked transposed slabs) ----------------
def init_params(key):
    ks = jax.random.split(key, 2 + N_LAYERS)

    def w(k, shape, scale=0.02):
        return scale * jax.random.normal(k, shape, dtype=jnp.float32)

    params = {
        "embed": w(ks[0], (VOCAB, HIDDEN)),
        "final_norm": jnp.ones((HIDDEN,), jnp.float32),
        "lm_head": w(ks[1], (VOCAB, HIDDEN)),   # nn.Linear(hidden, vocab, bias=False): [out, in]
        "layers": [],
    }
    for i in range(N_LAYERS):
        lk = jax.random.split(ks[2 + i], 7)
        params["layers"].append({
            "input_norm": jnp.ones((HIDDEN,), jnp.float32),
            "post_norm": jnp.ones((HIDDEN,), jnp.float32),
            "wq": w(lk[0], (HIDDEN, HIDDEN)),
            "wk": w(lk[1], (HIDDEN, HIDDEN)),
            "wv": w(lk[2], (HIDDEN, HIDDEN)),
            "wo": w(lk[3], (HIDDEN, HIDDEN)),
            "w_gate": w(lk[4], (INTERMEDIATE, HIDDEN)),
            "w_up": w(lk[5], (INTERMEDIATE, HIDDEN)),
            "w_down": w(lk[6], (HIDDEN, INTERMEDIATE)),
        })
    return params


def prepare_params(params):
    """Stack per-layer weights on a leading L dim, fuse QKV / gate|up, transpose
    to [in, out], cast matmul weights to bf16, and pre-slice lm_head to the two
    candidate-token columns (lane-padded to 128)."""
    layers = params["layers"]
    g1 = jnp.stack([L["input_norm"].reshape(1, HIDDEN) for L in layers])         # [L,1,H]
    g2 = jnp.stack([L["post_norm"].reshape(1, HIDDEN) for L in layers])          # [L,1,H]
    wqkv_t = jnp.stack([jnp.concatenate([L["wq"].T, L["wk"].T, L["wv"].T], axis=1)
                        for L in layers]).astype(jnp.bfloat16)                   # [L,H,3H]
    wo_t = jnp.stack([L["wo"].T for L in layers]).astype(jnp.bfloat16)           # [L,H,H]
    wgu_t = jnp.stack([jnp.concatenate([L["w_gate"].T, L["w_up"].T], axis=1)
                       for L in layers]).astype(jnp.bfloat16)                    # [L,H,2I]
    wdn_t = jnp.stack([L["w_down"].T for L in layers]).astype(jnp.bfloat16)      # [L,I,H]

    cand = params["lm_head"][jnp.array(CANDIDATE_TOKENS), :]                     # [2,H]
    lm_head_cand = (jnp.zeros((HIDDEN, LANE), jnp.float32)
                    .at[:, :2].set(cand.T)).astype(jnp.bfloat16)                 # [H,128]

    return {
        "embed": params["embed"],
        "final_norm": params["final_norm"].reshape(1, HIDDEN),
        "lm_head_cand": lm_head_cand,
        "g1": g1, "g2": g2,
        "wqkv_t": wqkv_t, "wo_t": wo_t, "wgu_t": wgu_t, "wdn_t": wdn_t,
    }


# ---------------- forward ----------------
def rlhf_flow_llama_math_rm_forward(params, input_ids, positions):
    B, S = input_ids.shape
    if S <= POOL_OFFSET:
        raise ValueError(f"sequence length {S} must be > pooling offset {POOL_OFFSET}")

    x = params["embed"][input_ids]                                # [B,S,H] gather = glue

    # RoPE cos/sin tables tiled to full hidden width [B, S, H] (glue).
    inv_freq = 1.0 / (ROPE_BASE ** (jnp.arange(0, HEAD_DIM, 2, dtype=jnp.float32) / HEAD_DIM))
    ang = positions.astype(jnp.float32)[..., None] * inv_freq[None, None, :]     # [B,S,Dh/2]
    cos_dh = jnp.concatenate([jnp.cos(ang), jnp.cos(ang)], axis=-1)              # [B,S,Dh]
    sin_dh = jnp.concatenate([jnp.sin(ang), jnp.sin(ang)], axis=-1)
    cos = jnp.tile(cos_dh, (1, 1, N_HEADS))                                      # [B,S,H]
    sin = jnp.tile(sin_dh, (1, 1, N_HEADS))

    hidden = pallas_backbone(x, cos, sin, params)                 # one call, all layers

    # Pooler(LAST, offset=3): take the pooled hidden row per sequence, then
    # final-norm + candidate-sliced lm_head only on that row (identical to
    # lm_head-on-all + pool, since pooling is a row select).
    pool_idx = S - 1 - POOL_OFFSET
    xp = hidden[:, pool_idx, :]                                   # [B,H] gather = glue
    plus_step_scores = pallas_head(xp, params["final_norm"], params["lm_head_cand"])
    return plus_step_scores                                       # [B,1] f32


if __name__ == "__main__":
    key = jax.random.PRNGKey(0)
    pkey, dkey = jax.random.split(key)
    params = prepare_params(init_params(pkey))

    B, S = 2, 8
    input_ids = jax.random.randint(dkey, (B, S), 0, VOCAB, dtype=jnp.int32)
    positions = jnp.broadcast_to(jnp.arange(S, dtype=jnp.int32)[None, :], (B, S))

    fwd = jax.jit(rlhf_flow_llama_math_rm_forward)
    scores = jax.block_until_ready(fwd(params, input_ids, positions))
    assert scores.shape == (B, 1) and scores.dtype == jnp.float32
    assert bool(jnp.all((scores >= 0.0) & (scores <= 1.0)))
    print("KERNEL_OK")
</pallas_src>

<mosaic_0001>
module attributes {stable_mosaic.version = 11 : i64} {
  func.func @_backbone_kernel(%arg0: i32, %arg1: i32, %arg2: memref<1x8x128xf32, #tpu.memory_space<vmem>>, %arg3: memref<1x8x128xf32, #tpu.memory_space<vmem>>, %arg4: memref<1x8x128xf32, #tpu.memory_space<vmem>>, %arg5: memref<1x1x128xf32, #tpu.memory_space<vmem>>, %arg6: memref<1x128x384xbf16, #tpu.memory_space<vmem>>, %arg7: memref<1x128x128xbf16, #tpu.memory_space<vmem>>, %arg8: memref<1x1x128xf32, #tpu.memory_space<vmem>>, %arg9: memref<1x128x512xbf16, #tpu.memory_space<vmem>>, %arg10: memref<1x256x128xbf16, #tpu.memory_space<vmem>>, %arg11: memref<1x8x128xf32, #tpu.memory_space<vmem>>) attributes {dimension_semantics = [#tpu.dimension_semantics<parallel>, #tpu.dimension_semantics<arbitrary>], iteration_bounds = array<i64: 2, 2>, scalar_prefetch = 0 : i64, scratch_operands = 0 : i64, tpu.core_type = #tpu.core_type<tc>, window_params = [{transform_indices = @transform_0, window_bounds = array<i64: 1, 8, 128>}, {transform_indices = @transform_1, window_bounds = array<i64: 1, 8, 128>}, {transform_indices = @transform_2, window_bounds = array<i64: 1, 8, 128>}, {transform_indices = @transform_3, window_bounds = array<i64: 1, 1, 128>}, {transform_indices = @transform_4, window_bounds = array<i64: 1, 128, 384>}, {transform_indices = @transform_5, window_bounds = array<i64: 1, 128, 128>}, {transform_indices = @transform_6, window_bounds = array<i64: 1, 1, 128>}, {transform_indices = @transform_7, window_bounds = array<i64: 1, 128, 512>}, {transform_indices = @transform_8, window_bounds = array<i64: 1, 256, 128>}, {transform_indices = @transform_9, window_bounds = array<i64: 1, 8, 128>}]} {
    %c0_i32 = arith.constant 0 : i32
    %0 = arith.cmpi eq, %arg1, %c0_i32 : i32
    %1 = arith.extui %0 : i1 to i32
    %c0_i32_0 = arith.constant 0 : i32
    %2 = arith.cmpi ne, %1, %c0_i32_0 : i32
    scf.if %2 {
      %c0_56 = arith.constant 0 : index
      %c0_57 = arith.constant 0 : index
      %c0_58 = arith.constant 0 : index
      %173 = vector.load %arg2[%c0_56, %c0_57, %c0_58] : memref<1x8x128xf32, #tpu.memory_space<vmem>>, vector<1x8x128xf32>
      %174 = vector.shape_cast %173 : vector<1x8x128xf32> to vector<8x128xf32>
      %c0_59 = arith.constant 0 : index
      %c0_60 = arith.constant 0 : index
      %c0_61 = arith.constant 0 : index
      %175 = vector.load %arg11[%c0_59, %c0_60, %c0_61] : memref<1x8x128xf32, #tpu.memory_space<vmem>>, vector<1x8x128xf32>
      %176 = vector.shape_cast %175 : vector<1x8x128xf32> to vector<8x128xf32>
      %177 = vector.shape_cast %174 : vector<8x128xf32> to vector<1x8x128xf32>
      tpu.vector_store %arg11[%c0_59, %c0_60, %c0_61], %177 {strides = array<i32>} : memref<1x8x128xf32, #tpu.memory_space<vmem>>, vector<1x8x128xf32>,
    } else {
    }
    %c0 = arith.constant 0 : index
    %c0_1 = arith.constant 0 : index
    %c0_2 = arith.constant 0 : index
    %3 = vector.load %arg11[%c0, %c0_1, %c0_2] : memref<1x8x128xf32, #tpu.memory_space<vmem>>, vector<1x8x128xf32>
    %4 = vector.shape_cast %3 : vector<1x8x128xf32> to vector<8x128xf32>
    %c0_3 = arith.constant 0 : index
    %c0_4 = arith.constant 0 : index
    %c0_5 = arith.constant 0 : index
    %5 = vector.load %arg5[%c0_3, %c0_4, %c0_5] : memref<1x1x128xf32, #tpu.memory_space<vmem>>, vector<1x1x128xf32>
    %6 = vector.shape_cast %5 : vector<1x1x128xf32> to vector<1x128xf32>
    %7 = arith.mulf %4, %4 : vector<8x128xf32>
    %cst = arith.constant dense<0.000000e+00> : vector<8xf32>
    %8 = vector.multi_reduction <add>, %7, %cst [1] : vector<8x128xf32> to vector<8xf32>
    %9 = vector.shape_cast %8 : vector<8xf32> to vector<8x1xf32>
    %cst_6 = arith.constant 1.280000e+02 : f32
    %10 = vector.broadcast %cst_6 : f32 to vector<8x1xf32>
    %11 = arith.divf %9, %10 : vector<8x1xf32>
    %cst_7 = arith.constant 9.99999997E-7 : f32
    %12 = vector.broadcast %cst_7 : f32 to vector<8x1xf32>
    %13 = arith.addf %11, %12 : vector<8x1xf32>
    %14 = math.rsqrt %13 : vector<8x1xf32>
    %15 = vector.broadcast %14 : vector<8x1xf32> to vector<8x128xf32>
    %16 = arith.mulf %4, %15 : vector<8x128xf32>
    %17 = vector.broadcast %6 : vector<1x128xf32> to vector<8x128xf32>
    %18 = arith.mulf %16, %17 : vector<8x128xf32>
    %19 = arith.truncf %18 : vector<8x128xf32> to vector<8x128xbf16>
    %c0_8 = arith.constant 0 : index
    %c0_9 = arith.constant 0 : index
    %c0_10 = arith.constant 0 : index
    %20 = vector.load %arg6[%c0_8, %c0_9, %c0_10] : memref<1x128x384xbf16, #tpu.memory_space<vmem>>, vector<1x128x384xbf16>
    %21 = vector.shape_cast %20 : vector<1x128x384xbf16> to vector<128x384xbf16>
    %cst_11 = arith.constant dense<0.000000e+00> : vector<8x384xf32>
    %22 = tpu.matmul %19, %21, %cst_11 {dimension_numbers = #tpu.dot_dimension_numbers<[1], [0], [0], [1], [0, 0, 1, 1], [], []>} : vector<8x128xbf16>, vector<128x384xbf16>, vector<8x384xf32> -> vector<8x384xf32>
    %c0_12 = arith.constant 0 : index
    %c0_13 = arith.constant 0 : index
    %c0_14 = arith.constant 0 : index
    %23 = vector.load %arg3[%c0_12, %c0_13, %c0_14] : memref<1x8x128xf32, #tpu.memory_space<vmem>>, vector<1x8x128xf32>
    %24 = vector.shape_cast %23 : vector<1x8x128xf32> to vector<8x128xf32>
    %c0_15 = arith.constant 0 : index
    %c0_16 = arith.constant 0 : index
    %c0_17 = arith.constant 0 : index
    %25 = vector.load %arg4[%c0_15, %c0_16, %c0_17] : memref<1x8x128xf32, #tpu.memory_space<vmem>>, vector<1x8x128xf32>
    %26 = vector.shape_cast %25 : vector<1x8x128xf32> to vector<8x128xf32>
    %27 = vector.extract_strided_slice %22 {offsets = [0, 0], sizes = [8, 128], strides = [1, 1]} : vector<8x384xf32> to vector<8x128xf32>
    %28 = vector.extract_strided_slice %27 {offsets = [0, 0], sizes = [8, 16], strides = [1, 1]} : vector<8x128xf32> to vector<8x16xf32>
    %29 = vector.extract_strided_slice %27 {offsets = [0, 16], sizes = [8, 16], strides = [1, 1]} : vector<8x128xf32> to vector<8x16xf32>
    %cst_18 = arith.constant 0.000000e+00 : f32
    %30 = vector.broadcast %cst_18 : f32 to vector<8x16xf32>
    %31 = arith.subf %30, %29 : vector<8x16xf32>
    %32 = vector.extract_strided_slice %27 {offsets = [0, 32], sizes = [8, 16], strides = [1, 1]} : vector<8x128xf32> to vector<8x16xf32>
    %33 = vector.extract_strided_slice %27 {offsets = [0, 48], sizes = [8, 16], strides = [1, 1]} : vector<8x128xf32> to vector<8x16xf32>
    %cst_19 = arith.constant 0.000000e+00 : f32
    %34 = vector.broadcast %cst_19 : f32 to vector<8x16xf32>
    %35 = arith.subf %34, %33 : vector<8x16xf32>
    %36 = vector.extract_strided_slice %27 {offsets = [0, 64], sizes = [8, 16], strides = [1, 1]} : vector<8x128xf32> to vector<8x16xf32>
    %37 = vector.extract_strided_slice %27 {offsets = [0, 80], sizes = [8, 16], strides = [1, 1]} : vector<8x128xf32> to vector<8x16xf32>
    %cst_20 = arith.constant 0.000000e+00 : f32
    %38 = vector.broadcast %cst_20 : f32 to vector<8x16xf32>
    %39 = arith.subf %38, %37 : vector<8x16xf32>
    %40 = vector.extract_strided_slice %27 {offsets = [0, 96], sizes = [8, 16], strides = [1, 1]} : vector<8x128xf32> to vector<8x16xf32>
    %41 = vector.extract_strided_slice %27 {offsets = [0, 112], sizes = [8, 16], strides = [1, 1]} : vector<8x128xf32> to vector<8x16xf32>
    %cst_21 = arith.constant 0.000000e+00 : f32
    %42 = vector.broadcast %cst_21 : f32 to vector<8x16xf32>
    %43 = arith.subf %42, %41 : vector<8x16xf32>
    %44 = tpu.concatenate %31, %28, %35, %32, %39, %36, %43, %40 in 1 : vector<8x16xf32>, vector<8x16xf32>, vector<8x16xf32>, vector<8x16xf32>, vector<8x16xf32>, vector<8x16xf32>, vector<8x16xf32>, vector<8x16xf32> -> vector<8x128xf32>
    %45 = arith.mulf %27, %24 : vector<8x128xf32>
    %46 = arith.mulf %44, %26 : vector<8x128xf32>
    %47 = arith.addf %45, %46 : vector<8x128xf32>
    %48 = vector.extract_strided_slice %22 {offsets = [0, 128], sizes = [8, 128], strides = [1, 1]} : vector<8x384xf32> to vector<8x128xf32>
    %49 = vector.extract_strided_slice %48 {offsets = [0, 0], sizes = [8, 16], strides = [1, 1]} : vector<8x128xf32> to vector<8x16xf32>
    %50 = vector.extract_strided_slice %48 {offsets = [0, 16], sizes = [8, 16], strides = [1, 1]} : vector<8x128xf32> to vector<8x16xf32>
    %cst_22 = arith.constant 0.000000e+00 : f32
    %51 = vector.broadcast %cst_22 : f32 to vector<8x16xf32>
    %52 = arith.subf %51, %50 : vector<8x16xf32>
    %53 = vector.extract_strided_slice %48 {offsets = [0, 32], sizes = [8, 16], strides = [1, 1]} : vector<8x128xf32> to vector<8x16xf32>
    %54 = vector.extract_strided_slice %48 {offsets = [0, 48], sizes = [8, 16], strides = [1, 1]} : vector<8x128xf32> to vector<8x16xf32>
    %cst_23 = arith.constant 0.000000e+00 : f32
    %55 = vector.broadcast %cst_23 : f32 to vector<8x16xf32>
    %56 = arith.subf %55, %54 : vector<8x16xf32>
    %57 = vector.extract_strided_slice %48 {offsets = [0, 64], sizes = [8, 16], strides = [1, 1]} : vector<8x128xf32> to vector<8x16xf32>
    %58 = vector.extract_strided_slice %48 {offsets = [0, 80], sizes = [8, 16], strides = [1, 1]} : vector<8x128xf32> to vector<8x16xf32>
    %cst_24 = arith.constant 0.000000e+00 : f32
    %59 = vector.broadcast %cst_24 : f32 to vector<8x16xf32>
    %60 = arith.subf %59, %58 : vector<8x16xf32>
    %61 = vector.extract_strided_slice %48 {offsets = [0, 96], sizes = [8, 16], strides = [1, 1]} : vector<8x128xf32> to vector<8x16xf32>
    %62 = vector.extract_strided_slice %48 {offsets = [0, 112], sizes = [8, 16], strides = [1, 1]} : vector<8x128xf32> to vector<8x16xf32>
    %cst_25 = arith.constant 0.000000e+00 : f32
    %63 = vector.broadcast %cst_25 : f32 to vector<8x16xf32>
    %64 = arith.subf %63, %62 : vector<8x16xf32>
    %65 = tpu.concatenate %52, %49, %56, %53, %60, %57, %64, %61 in 1 : vector<8x16xf32>, vector<8x16xf32>, vector<8x16xf32>, vector<8x16xf32>, vector<8x16xf32>, vector<8x16xf32>, vector<8x16xf32>, vector<8x16xf32> -> vector<8x128xf32>
    %66 = arith.mulf %48, %24 : vector<8x128xf32>
    %67 = arith.mulf %65, %26 : vector<8x128xf32>
    %68 = arith.addf %66, %67 : vector<8x128xf32>
    %69 = vector.extract_strided_slice %22 {offsets = [0, 256], sizes = [8, 128], strides = [1, 1]} : vector<8x384xf32> to vector<8x128xf32>
    %70 = vector.extract_strided_slice %47 {offsets = [0, 0], sizes = [8, 32], strides = [1, 1]} : vector<8x128xf32> to vector<8x32xf32>
    %71 = vector.extract_strided_slice %47 {offsets = [0, 32], sizes = [8, 32], strides = [1, 1]} : vector<8x128xf32> to vector<8x32xf32>
    %72 = vector.extract_strided_slice %47 {offsets = [0, 64], sizes = [8, 32], strides = [1, 1]} : vector<8x128xf32> to vector<8x32xf32>
    %73 = vector.extract_strided_slice %47 {offsets = [0, 96], sizes = [8, 32], strides = [1, 1]} : vector<8x128xf32> to vector<8x32xf32>
    %74 = vector.shape_cast %70 : vector<8x32xf32> to vector<1x8x32xf32>
    %75 = vector.shape_cast %71 : vector<8x32xf32> to vector<1x8x32xf32>
    %76 = vector.shape_cast %72 : vector<8x32xf32> to vector<1x8x32xf32>
    %77 = vector.shape_cast %73 : vector<8x32xf32> to vector<1x8x32xf32>
    %78 = tpu.concatenate %74, %75, %76, %77 in 0 : vector<1x8x32xf32>, vector<1x8x32xf32>, vector<1x8x32xf32>, vector<1x8x32xf32> -> vector<4x8x32xf32>
    %79 = arith.truncf %78 : vector<4x8x32xf32> to vector<4x8x32xbf16>
    %80 = vector.extract_strided_slice %68 {offsets = [0, 0], sizes = [8, 32], strides = [1, 1]} : vector<8x128xf32> to vector<8x32xf32>
    %81 = vector.extract_strided_slice %68 {offsets = [0, 32], sizes = [8, 32], strides = [1, 1]} : vector<8x128xf32> to vector<8x32xf32>
    %82 = vector.extract_strided_slice %68 {offsets = [0, 64], sizes = [8, 32], strides = [1, 1]} : vector<8x128xf32> to vector<8x32xf32>
    %83 = vector.extract_strided_slice %68 {offsets = [0, 96], sizes = [8, 32], strides = [1, 1]} : vector<8x128xf32> to vector<8x32xf32>
    %84 = vector.shape_cast %80 : vector<8x32xf32> to vector<1x8x32xf32>
    %85 = vector.shape_cast %81 : vector<8x32xf32> to vector<1x8x32xf32>
    %86 = vector.shape_cast %82 : vector<8x32xf32> to vector<1x8x32xf32>
    %87 = vector.shape_cast %83 : vector<8x32xf32> to vector<1x8x32xf32>
    %88 = tpu.concatenate %84, %85, %86, %87 in 0 : vector<1x8x32xf32>, vector<1x8x32xf32>, vector<1x8x32xf32>, vector<1x8x32xf32> -> vector<4x8x32xf32>
    %89 = arith.truncf %88 : vector<4x8x32xf32> to vector<4x8x32xbf16>
    %90 = vector.extract_strided_slice %69 {offsets = [0, 0], sizes = [8, 32], strides = [1, 1]} : vector<8x128xf32> to vector<8x32xf32>
    %91 = vector.extract_strided_slice %69 {offsets = [0, 32], sizes = [8, 32], strides = [1, 1]} : vector<8x128xf32> to vector<8x32xf32>
    %92 = vector.extract_strided_slice %69 {offsets = [0, 64], sizes = [8, 32], strides = [1, 1]} : vector<8x128xf32> to vector<8x32xf32>
    %93 = vector.extract_strided_slice %69 {offsets = [0, 96], sizes = [8, 32], strides = [1, 1]} : vector<8x128xf32> to vector<8x32xf32>
    %94 = vector.shape_cast %90 : vector<8x32xf32> to vector<1x8x32xf32>
    %95 = vector.shape_cast %91 : vector<8x32xf32> to vector<1x8x32xf32>
    %96 = vector.shape_cast %92 : vector<8x32xf32> to vector<1x8x32xf32>
    %97 = vector.shape_cast %93 : vector<8x32xf32> to vector<1x8x32xf32>
    %98 = tpu.concatenate %94, %95, %96, %97 in 0 : vector<1x8x32xf32>, vector<1x8x32xf32>, vector<1x8x32xf32>, vector<1x8x32xf32> -> vector<4x8x32xf32>
    %99 = arith.truncf %98 : vector<4x8x32xf32> to vector<4x8x32xbf16>
    %100 = tpu.iota {dimensions = array<i32: 0>} : vector<8x8xi32>
    %101 = tpu.iota {dimensions = array<i32: 1>} : vector<8x8xi32>
    %102 = arith.cmpi sle, %101, %100 : vector<8x8xi32>
    "tpu.trace_start"() <{level = 10 : i32, message = "hqd,hkd->hqk"}> : () -> ()
    %cst_26 = arith.constant dense<0.000000e+00> : vector<4x8x8xf32>
    %103 = tpu.matmul %79, %89, %cst_26 {dimension_numbers = #tpu.dot_dimension_numbers<[2], [2], [1], [1], [0, 0, 0, 1, 1, 1], [0], [0]>} : vector<4x8x32xbf16>, vector<4x8x32xbf16>, vector<4x8x8xf32> -> vector<4x8x8xf32>
    "tpu.trace_stop"() : () -> ()
    %cst_27 = arith.constant 0.176776692 : f32
    %104 = vector.broadcast %cst_27 : f32 to vector<4x8x8xf32>
    %105 = arith.mulf %103, %104 : vector<4x8x8xf32>
    %106 = vector.shape_cast %102 : vector<8x8xi1> to vector<1x8x8xi1>
    %cst_28 = arith.constant -1.000000e+30 : f32
    %107 = vector.shape_cast %106 : vector<1x8x8xi1> to vector<1x8x8xi1>
    %108 = vector.broadcast %107 : vector<1x8x8xi1> to vector<4x8x8xi1>
    %109 = vector.broadcast %cst_28 : f32 to vector<4x8x8xf32>
    %110 = arith.select %108, %105, %109 : vector<4x8x8xi1>, vector<4x8x8xf32>
    %cst_29 = arith.constant dense<0xFF800000> : vector<4x8xf32>
    %111 = vector.multi_reduction <maximumf>, %110, %cst_29 [2] : vector<4x8x8xf32> to vector<4x8xf32>
    %112 = vector.shape_cast %111 : vector<4x8xf32> to vector<4x8x1xf32>
    %113 = vector.broadcast %112 : vector<4x8x1xf32> to vector<4x8x8xf32>
    %114 = arith.subf %110, %113 : vector<4x8x8xf32>
    %115 = math.exp %114 : vector<4x8x8xf32>
    %cst_30 = arith.constant dense<0.000000e+00> : vector<4x8xf32>
    %116 = vector.multi_reduction <add>, %115, %cst_30 [2] : vector<4x8x8xf32> to vector<4x8xf32>
    %117 = vector.shape_cast %116 : vector<4x8xf32> to vector<4x8x1xf32>
    %118 = vector.broadcast %117 : vector<4x8x1xf32> to vector<4x8x8xf32>
    %119 = arith.divf %115, %118 : vector<4x8x8xf32>
    %120 = arith.truncf %119 : vector<4x8x8xf32> to vector<4x8x8xbf16>
    "tpu.trace_start"() <{level = 10 : i32, message = "hqk,hkd->hqd"}> : () -> ()
    %cst_31 = arith.constant dense<0.000000e+00> : vector<4x8x32xf32>
    %121 = tpu.matmul %120, %99, %cst_31 {dimension_numbers = #tpu.dot_dimension_numbers<[2], [1], [1], [2], [0, 0, 0, 1, 1, 2], [0], [0]>} : vector<4x8x8xbf16>, vector<4x8x32xbf16>, vector<4x8x32xf32> -> vector<4x8x32xf32>
    "tpu.trace_stop"() : () -> ()
    %122 = vector.extract_strided_slice %121 {offsets = [0, 0, 0], sizes = [1, 8, 32], strides = [1, 1, 1]} : vector<4x8x32xf32> to vector<1x8x32xf32>
    %123 = vector.shape_cast %122 : vector<1x8x32xf32> to vector<8x32xf32>
    %124 = vector.extract_strided_slice %121 {offsets = [1, 0, 0], sizes = [1, 8, 32], strides = [1, 1, 1]} : vector<4x8x32xf32> to vector<1x8x32xf32>
    %125 = vector.shape_cast %124 : vector<1x8x32xf32> to vector<8x32xf32>
    %126 = vector.extract_strided_slice %121 {offsets = [2, 0, 0], sizes = [1, 8, 32], strides = [1, 1, 1]} : vector<4x8x32xf32> to vector<1x8x32xf32>
    %127 = vector.shape_cast %126 : vector<1x8x32xf32> to vector<8x32xf32>
    %128 = vector.extract_strided_slice %121 {offsets = [3, 0, 0], sizes = [1, 8, 32], strides = [1, 1, 1]} : vector<4x8x32xf32> to vector<1x8x32xf32>
    %129 = vector.shape_cast %128 : vector<1x8x32xf32> to vector<8x32xf32>
    %130 = tpu.concatenate %123, %125, %127, %129 in 1 : vector<8x32xf32>, vector<8x32xf32>, vector<8x32xf32>, vector<8x32xf32> -> vector<8x128xf32>
    %131 = arith.truncf %130 : vector<8x128xf32> to vector<8x128xbf16>
    %c0_32 = arith.constant 0 : index
    %c0_33 = arith.constant 0 : index
    %c0_34 = arith.constant 0 : index
    %132 = vector.load %arg7[%c0_32, %c0_33, %c0_34] : memref<1x128x128xbf16, #tpu.memory_space<vmem>>, vector<1x128x128xbf16>
    %133 = vector.shape_cast %132 : vector<1x128x128xbf16> to vector<128x128xbf16>
    %cst_35 = arith.constant dense<0.000000e+00> : vector<8x128xf32>
    %134 = tpu.matmul %131, %133, %cst_35 {dimension_numbers = #tpu.dot_dimension_numbers<[1], [0], [0], [1], [0, 0, 1, 1], [], []>} : vector<8x128xbf16>, vector<128x128xbf16>, vector<8x128xf32> -> vector<8x128xf32>
    %135 = arith.addf %4, %134 : vector<8x128xf32>
    %c0_36 = arith.constant 0 : index
    %c0_37 = arith.constant 0 : index
    %c0_38 = arith.constant 0 : index
    %136 = vector.load %arg8[%c0_36, %c0_37, %c0_38] : memref<1x1x128xf32, #tpu.memory_space<vmem>>, vector<1x1x128xf32>
    %137 = vector.shape_cast %136 : vector<1x1x128xf32> to vector<1x128xf32>
    %138 = arith.mulf %135, %135 : vector<8x128xf32>
    %cst_39 = arith.constant dense<0.000000e+00> : vector<8xf32>
    %139 = vector.multi_reduction <add>, %138, %cst_39 [1] : vector<8x128xf32> to vector<8xf32>
    %140 = vector.shape_cast %139 : vector<8xf32> to vector<8x1xf32>
    %cst_40 = arith.constant 1.280000e+02 : f32
    %141 = vector.broadcast %cst_40 : f32 to vector<8x1xf32>
    %142 = arith.divf %140, %141 : vector<8x1xf32>
    %cst_41 = arith.constant 9.99999997E-7 : f32
    %143 = vector.broadcast %cst_41 : f32 to vector<8x1xf32>
    %144 = arith.addf %142, %143 : vector<8x1xf32>
    %145 = math.rsqrt %144 : vector<8x1xf32>
    %146 = vector.broadcast %145 : vector<8x1xf32> to vector<8x128xf32>
    %147 = arith.mulf %135, %146 : vector<8x128xf32>
    %148 = vector.broadcast %137 : vector<1x128xf32> to vector<8x128xf32>
    %149 = arith.mulf %147, %148 : vector<8x128xf32>
    %150 = arith.truncf %149 : vector<8x128xf32> to vector<8x128xbf16>
    %c0_42 = arith.constant 0 : index
    %c0_43 = arith.constant 0 : index
    %c0_44 = arith.constant 0 : index
    %151 = vector.load %arg9[%c0_42, %c0_43, %c0_44] : memref<1x128x512xbf16, #tpu.memory_space<vmem>>, vector<1x128x512xbf16>
    %152 = vector.shape_cast %151 : vector<1x128x512xbf16> to vector<128x512xbf16>
    %cst_45 = arith.constant dense<0.000000e+00> : vector<8x512xf32>
    %153 = tpu.matmul %150, %152, %cst_45 {dimension_numbers = #tpu.dot_dimension_numbers<[1], [0], [0], [1], [0, 0, 1, 1], [], []>} : vector<8x128xbf16>, vector<128x512xbf16>, vector<8x512xf32> -> vector<8x512xf32>
    %154 = vector.extract_strided_slice %153 {offsets = [0, 0], sizes = [8, 256], strides = [1, 1]} : vector<8x512xf32> to vector<8x256xf32>
    %155 = vector.extract_strided_slice %153 {offsets = [0, 256], sizes = [8, 256], strides = [1, 1]} : vector<8x512xf32> to vector<8x256xf32>
    %cst_46 = arith.constant 5.000000e-01 : f32
    %156 = vector.broadcast %cst_46 : f32 to vector<8x256xf32>
    %157 = arith.mulf %156, %154 : vector<8x256xf32>
    %158 = math.tanh %157 : vector<8x256xf32>
    %cst_47 = arith.constant 1.000000e+00 : f32
    %159 = vector.broadcast %cst_47 : f32 to vector<8x256xf32>
    %160 = arith.addf %158, %159 : vector<8x256xf32>
    %cst_48 = arith.constant 5.000000e-01 : f32
    %161 = vector.broadcast %cst_48 : f32 to vector<8x256xf32>
    %162 = arith.mulf %161, %160 : vector<8x256xf32>
    %163 = arith.mulf %154, %162 : vector<8x256xf32>
    %164 = arith.mulf %163, %155 : vector<8x256xf32>
    %165 = arith.truncf %164 : vector<8x256xf32> to vector<8x256xbf16>
    %c0_49 = arith.constant 0 : index
    %c0_50 = arith.constant 0 : index
    %c0_51 = arith.constant 0 : index
    %166 = vector.load %arg10[%c0_49, %c0_50, %c0_51] : memref<1x256x128xbf16, #tpu.memory_space<vmem>>, vector<1x256x128xbf16>
    %167 = vector.shape_cast %166 : vector<1x256x128xbf16> to vector<256x128xbf16>
    %cst_52 = arith.constant dense<0.000000e+00> : vector<8x128xf32>
    %168 = tpu.matmul %165, %167, %cst_52 {dimension_numbers = #tpu.dot_dimension_numbers<[1], [0], [0], [1], [0, 0, 1, 1], [], []>} : vector<8x256xbf16>, vector<256x128xbf16>, vector<8x128xf32> -> vector<8x128xf32>
    %169 = arith.addf %135, %168 : vector<8x128xf32>
    %c0_53 = arith.constant 0 : index
    %c0_54 = arith.constant 0 : index
    %c0_55 = arith.constant 0 : index
    %170 = vector.load %arg11[%c0_53, %c0_54, %c0_55] : memref<1x8x128xf32, #tpu.memory_space<vmem>>, vector<1x8x128xf32>
    %171 = vector.shape_cast %170 : vector<1x8x128xf32> to vector<8x128xf32>
    %172 = vector.shape_cast %169 : vector<8x128xf32> to vector<1x8x128xf32>
    tpu.vector_store %arg11[%c0_53, %c0_54, %c0_55], %172 {strides = array<i32>} : memref<1x8x128xf32, #tpu.memory_space<vmem>>, vector<1x8x128xf32>,
    return
  }
  func.func @transform_0(%arg0: i32, %arg1: i32) -> (i32, i32, i32) {
    %c0_i32 = arith.constant 0 : i32
    %c0_i32_0 = arith.constant 0 : i32
    %c0_i32_1 = arith.constant 0 : i32
    return %arg0, %c0_i32, %c0_i32_0 : i32, i32, i32
  }
  func.func @transform_1(%arg0: i32, %arg1: i32) -> (i32, i32, i32) {
    %c0_i32 = arith.constant 0 : i32
    %c0_i32_0 = arith.constant 0 : i32
    %c0_i32_1 = arith.constant 0 : i32
    return %arg0, %c0_i32, %c0_i32_0 : i32, i32, i32
  }
  func.func @transform_2(%arg0: i32, %arg1: i32) -> (i32, i32, i32) {
    %c0_i32 = arith.constant 0 : i32
    %c0_i32_0 = arith.constant 0 : i32
    %c0_i32_1 = arith.constant 0 : i32
    return %arg0, %c0_i32, %c0_i32_0 : i32, i32, i32
  }
  func.func @transform_3(%arg0: i32, %arg1: i32) -> (i32, i32, i32) {
    %c0_i32 = arith.constant 0 : i32
    %c0_i32_0 = arith.constant 0 : i32
    %c0_i32_1 = arith.constant 0 : i32
    return %arg1, %c0_i32, %c0_i32_0 : i32, i32, i32
  }
  func.func @transform_4(%arg0: i32, %arg1: i32) -> (i32, i32, i32) {
    %c0_i32 = arith.constant 0 : i32
    %c0_i32_0 = arith.constant 0 : i32
    %c0_i32_1 = arith.constant 0 : i32
    return %arg1, %c0_i32, %c0_i32_0 : i32, i32, i32
  }
  func.func @transform_5(%arg0: i32, %arg1: i32) -> (i32, i32, i32) {
    %c0_i32 = arith.constant 0 : i32
    %c0_i32_0 = arith.constant 0 : i32
    %c0_i32_1 = arith.constant 0 : i32
    return %arg1, %c0_i32, %c0_i32_0 : i32, i32, i32
  }
  func.func @transform_6(%arg0: i32, %arg1: i32) -> (i32, i32, i32) {
    %c0_i32 = arith.constant 0 : i32
    %c0_i32_0 = arith.constant 0 : i32
    %c0_i32_1 = arith.constant 0 : i32
    return %arg1, %c0_i32, %c0_i32_0 : i32, i32, i32
  }
  func.func @transform_7(%arg0: i32, %arg1: i32) -> (i32, i32, i32) {
    %c0_i32 = arith.constant 0 : i32
    %c0_i32_0 = arith.constant 0 : i32
    %c0_i32_1 = arith.constant 0 : i32
    return %arg1, %c0_i32, %c0_i32_0 : i32, i32, i32
  }
  func.func @transform_8(%arg0: i32, %arg1: i32) -> (i32, i32, i32) {
    %c0_i32 = arith.constant 0 : i32
    %c0_i32_0 = arith.constant 0 : i32
    %c0_i32_1 = arith.constant 0 : i32
    return %arg1, %c0_i32, %c0_i32_0 : i32, i32, i32
  }
  func.func @transform_9(%arg0: i32, %arg1: i32) -> (i32, i32, i32) {
    %c0_i32 = arith.constant 0 : i32
    %c0_i32_0 = arith.constant 0 : i32
    %c0_i32_1 = arith.constant 0 : i32
    return %arg0, %c0_i32, %c0_i32_0 : i32, i32, i32
  }
}

module attributes {stable_mosaic.version = 11 : i64} {
  func.func @_head_kernel(%arg0: memref<2x128xf32, #tpu.memory_space<vmem>>, %arg1: memref<1x128xf32, #tpu.memory_space<vmem>>, %arg2: memref<128x128xbf16, #tpu.memory_space<vmem>>, %arg3: memref<2x1xf32, #tpu.memory_space<vmem>>) attributes {dimension_semantics = [], scalar_prefetch = 0 : i64, scratch_operands = 0 : i64, tpu.core_type = #tpu.core_type<tc>} {
    %c0 = arith.constant 0 : index
    %c0_0 = arith.constant 0 : index
    %0 = vector.load %arg0[%c0, %c0_0] : memref<2x128xf32, #tpu.memory_space<vmem>>, vector<2x128xf32>
    %c0_1 = arith.constant 0 : index
    %c0_2 = arith.constant 0 : index
    %1 = vector.load %arg1[%c0_1, %c0_2] : memref<1x128xf32, #tpu.memory_space<vmem>>, vector<1x128xf32>
    %2 = arith.mulf %0, %0 : vector<2x128xf32>
    %cst = arith.constant dense<0.000000e+00> : vector<2xf32>
    %3 = vector.multi_reduction <add>, %2, %cst [1] : vector<2x128xf32> to vector<2xf32>
    %4 = vector.shape_cast %3 : vector<2xf32> to vector<2x1xf32>
    %cst_3 = arith.constant 1.280000e+02 : f32
    %5 = vector.broadcast %cst_3 : f32 to vector<2x1xf32>
    %6 = arith.divf %4, %5 : vector<2x1xf32>
    %cst_4 = arith.constant 9.99999997E-7 : f32
    %7 = vector.broadcast %cst_4 : f32 to vector<2x1xf32>
    %8 = arith.addf %6, %7 : vector<2x1xf32>
    %9 = math.rsqrt %8 : vector<2x1xf32>
    %10 = vector.broadcast %9 : vector<2x1xf32> to vector<2x128xf32>
    %11 = arith.mulf %0, %10 : vector<2x128xf32>
    %12 = vector.broadcast %1 : vector<1x128xf32> to vector<2x128xf32>
    %13 = arith.mulf %11, %12 : vector<2x128xf32>
    %14 = arith.truncf %13 : vector<2x128xf32> to vector<2x128xbf16>
    %c0_5 = arith.constant 0 : index
    %c0_6 = arith.constant 0 : index
    %15 = vector.load %arg2[%c0_5, %c0_6] : memref<128x128xbf16, #tpu.memory_space<vmem>>, vector<128x128xbf16>
    %cst_7 = arith.constant dense<0.000000e+00> : vector<2x128xf32>
    %16 = tpu.matmul %14, %15, %cst_7 {dimension_numbers = #tpu.dot_dimension_numbers<[1], [0], [0], [1], [0, 0, 1, 1], [], []>} : vector<2x128xbf16>, vector<128x128xbf16>, vector<2x128xf32> -> vector<2x128xf32>
    %17 = vector.extract_strided_slice %16 {offsets = [0, 0], sizes = [2, 1], strides = [1, 1]} : vector<2x128xf32> to vector<2x1xf32>
    %18 = vector.extract_strided_slice %16 {offsets = [0, 1], sizes = [2, 1], strides = [1, 1]} : vector<2x128xf32> to vector<2x1xf32>
    %19 = arith.maximumf %17, %18 : vector<2x1xf32>
    %20 = arith.subf %17, %19 : vector<2x1xf32>
    %21 = math.exp %20 : vector<2x1xf32>
    %22 = arith.subf %18, %19 : vector<2x1xf32>
    %23 = math.exp %22 : vector<2x1xf32>
    %24 = arith.addf %21, %23 : vector<2x1xf32>
    %25 = arith.divf %21, %24 : vector<2x1xf32>
    %c0_8 = arith.constant 0 : index
    %c0_9 = arith.constant 0 : index
    %26 = vector.load %arg3[%c0_8, %c0_9] : memref<2x1xf32, #tpu.memory_space<vmem>>, vector<2x1xf32>
    tpu.vector_store %arg3[%c0_8, %c0_9], %25 {strides = array<i32>} : memref<2x1xf32, #tpu.memory_space<vmem>>, vector<2x1xf32>,
    return
  }
}

</mosaic_0001>

<llo_original>
// kernel: tile.14
$region0: #{tile.14}
  %s0 = inlined_call_operand.vmem [shape: f32[2,8,4,32], index: 0, kind: input, shape index: {}]
  %s1 = inlined_call_operand.vmem [shape: f32[2,8,128], index: 1, kind: output, shape index: {}]
  $region1: #{tile.14} parent=0
    #allocation0 [shape = 'u8[65536]{0}', space=vmem, size = 0x10000, scoped, tag = 'scoped mem for input reshape']
    %s3 = sshll.u32 1, 4
    %s4 = ssub.s32 %s3, 1
    %s5 = smul.addr 4, 15
    %s6 = scalar_lea.vmem %s0, %s5
    %v7 = vld [vmem:[%s6] sm:%s4]
    %s8 = scalar_lea.vmem [#allocation0], 120
    %9 = vst [vmem:[%s8] sm:%s4] %v7
    %s10 = smul.addr 4, 14
    %s11 = scalar_lea.vmem %s0, %s10
    %v12 = vld [vmem:[%s11] sm:%s4]
    %s13 = scalar_lea.vmem [#allocation0], 112
    %14 = vst [vmem:[%s13] sm:%s4] %v12
    %s15 = smul.addr 4, 13
    %s16 = scalar_lea.vmem %s0, %s15
    %v17 = vld [vmem:[%s16] sm:%s4]
    %s18 = scalar_lea.vmem [#allocation0], 104
    %19 = vst [vmem:[%s18] sm:%s4] %v17
    %s20 = smul.addr 4, 12
    %s21 = scalar_lea.vmem %s0, %s20
    %v22 = vld [vmem:[%s21] sm:%s4]
    %s23 = scalar_lea.vmem [#allocation0], 96
    %24 = vst [vmem:[%s23] sm:%s4] %v22
    %s25 = smul.addr 4, 11
    %s26 = scalar_lea.vmem %s0, %s25
    %v27 = vld [vmem:[%s26] sm:%s4]
    %s28 = scalar_lea.vmem [#allocation0], 88
    %29 = vst [vmem:[%s28] sm:%s4] %v27
    %s30 = smul.addr 4, 10
    %s31 = scalar_lea.vmem %s0, %s30
    %v32 = vld [vmem:[%s31] sm:%s4]
    %s33 = scalar_lea.vmem [#allocation0], 80
    %34 = vst [vmem:[%s33] sm:%s4] %v32
    %s35 = smul.addr 4, 9
    %s36 = scalar_lea.vmem %s0, %s35
    %v37 = vld [vmem:[%s36] sm:%s4]
    %s38 = scalar_lea.vmem [#allocation0], 72
    %39 = vst [vmem:[%s38] sm:%s4] %v37
    %s40 = smul.addr 4, 8
    %s41 = scalar_lea.vmem %s0, %s40
    %v42 = vld [vmem:[%s41] sm:%s4]
    %s43 = scalar_lea.vmem [#allocation0], 64
    %44 = vst [vmem:[%s43] sm:%s4] %v42
    %s45 = smul.addr 4, 7
    %s46 = scalar_lea.vmem %s0, %s45
    %v47 = vld [vmem:[%s46] sm:%s4]
    %s48 = scalar_lea.vmem [#allocation0], 56
    %49 = vst [vmem:[%s48] sm:%s4] %v47
    %s50 = smul.addr 4, 6
    %s51 = scalar_lea.vmem %s0, %s50
    %v52 = vld [vmem:[%s51] sm:%s4]
    %s53 = scalar_lea.vmem [#allocation0], 48
    %54 = vst [vmem:[%s53] sm:%s4] %v52
    %s55 = smul.addr 4, 5
    %s56 = scalar_lea.vmem %s0, %s55
    %v57 = vld [vmem:[%s56] sm:%s4]
    %s58 = scalar_lea.vmem [#allocation0], 40
    %59 = vst [vmem:[%s58] sm:%s4] %v57
    %s60 = smul.addr 4, 4
    %s61 = scalar_lea.vmem %s0, %s60
    %v62 = vld [vmem:[%s61] sm:%s4]
    %s63 = scalar_lea.vmem [#allocation0], 32
    %64 = vst [vmem:[%s63] sm:%s4] %v62
    %s65 = smul.addr 4, 3
    %s66 = scalar_lea.vmem %s0, %s65
    %v67 = vld [vmem:[%s66] sm:%s4]
    %s68 = scalar_lea.vmem [#allocation0], 24
    %69 = vst [vmem:[%s68] sm:%s4] %v67
    %s70 = smul.addr 4, 2
    %s71 = scalar_lea.vmem %s0, %s70
    %v72 = vld [vmem:[%s71] sm:%s4]
    %s73 = scalar_lea.vmem [#allocation0], 16
    %74 = vst [vmem:[%s73] sm:%s4] %v72
    %s75 = scalar_lea.vmem %s0, 4
    %v76 = vld [vmem:[%s75] sm:%s4]
    %s77 = scalar_lea.vmem [#allocation0], 8
    %78 = vst [vmem:[%s77] sm:%s4] %v76
    %v79 = vld [vmem:[%s0] sm:%s4]
    %80 = vst [vmem:[#allocation0] sm:%s4] %v79
    %v81 = vld [vmem:[#allocation0] ss:$8 sm:$0xf]
    %v82 = vld [vmem:[#allocation0] ss:$8 sm:$0xf0]
    %vm83 = vcmask 1047556
    %v84 = vsel %vm83, %v82, %v81
    %vm85 = vcmask 261120
    %86 = vst.msk [vmem:[%s1] sm:$0xff] %vm85, %v84
    %s87 = scalar_lea.vmem [#allocation0], 64
    %v88 = vld [vmem:[%s87] ss:$8 sm:$0xf]
    %s89 = scalar_lea.vmem [#allocation0], 64
    %v90 = vld [vmem:[%s89] ss:$8 sm:$0xf0]
    %vm91 = vcmask 1047556
    %v92 = vsel %vm91, %v90, %v88
    %vm93 = vcmask 261120
    %s94 = scalar_lea.vmem %s1, 8
    %95 = vst.msk [vmem:[%s94] sm:$0xff] %vm93, %v92
    %s96 = scalar_lea.vmem [#allocation0], 3
    %v97 = vld [vmem:[%s96] ss:$8 sm:$0xf]
    %s98 = scalar_lea.vmem [#allocation0], 3
    %v99 = vld [vmem:[%s98] ss:$8 sm:$0xf0]
    %vm100 = vcmask 1047556
    %v101 = vsel %vm100, %v99, %v97
    %102 = vrot.lane.b32.xlu0 %v101, 96
    %v103 = vpop.permute.xlu0 %102
    %vm104 = vcmask 1048320
    %105 = vst.msk [vmem:[%s1] sm:$0xff] %vm104, %v103
    %s106 = scalar_lea.vmem [#allocation0], 67
    %v107 = vld [vmem:[%s106] ss:$8 sm:$0xf]
    %s108 = scalar_lea.vmem [#allocation0], 67
    %v109 = vld [vmem:[%s108] ss:$8 sm:$0xf0]
    %vm110 = vcmask 1047556
    %v111 = vsel %vm110, %v109, %v107
    %112 = vrot.lane.b32.xlu0 %v111, 96
    %v113 = vpop.permute.xlu0 %112
    %vm114 = vcmask 1048320
    %s115 = scalar_lea.vmem %s1, 8
    %116 = vst.msk [vmem:[%s115] sm:$0xff] %vm114, %v113
    %s117 = scalar_lea.vmem [#allocation0], 2
    %v118 = vld [vmem:[%s117] ss:$8 sm:$0xf]
    %s119 = scalar_lea.vmem [#allocation0], 2
    %v120 = vld [vmem:[%s119] ss:$8 sm:$0xf0]
    %vm121 = vcmask 1047556
    %v122 = vsel %vm121, %v120, %v118
    %123 = vrot.lane.b32.xlu0 %v122, 64
    %v124 = vpop.permute.xlu0 %123
    %vm125 = vcmask 785920
    %126 = vst.msk [vmem:[%s1] sm:$0xff] %vm125, %v124
    %s127 = scalar_lea.vmem [#allocation0], 66
    %v128 = vld [vmem:[%s127] ss:$8 sm:$0xf]
    %s129 = scalar_lea.vmem [#allocation0], 66
    %v130 = vld [vmem:[%s129] ss:$8 sm:$0xf0]
    %vm131 = vcmask 1047556
    %v132 = vsel %vm131, %v130, %v128
    %133 = vrot.lane.b32.xlu0 %v132, 64
    %v134 = vpop.permute.xlu0 %133
    %vm135 = vcmask 785920
    %s136 = scalar_lea.vmem %s1, 8
    %137 = vst.msk [vmem:[%s136] sm:$0xff] %vm135, %v134
    %s138 = scalar_lea.vmem [#allocation0], 1
    %v139 = vld [vmem:[%s138] ss:$8 sm:$0xf]
    %s140 = scalar_lea.vmem [#allocation0], 1
    %v141 = vld [vmem:[%s140] ss:$8 sm:$0xf0]
    %vm142 = vcmask 1047556
    %v143 = vsel %vm142, %v141, %v139
    %144 = vrot.lane.b32.xlu0 %v143, 32
    %v145 = vpop.permute.xlu0 %144
    %vm146 = vcmask 523520
    %147 = vst.msk [vmem:[%s1] sm:$0xff] %vm146, %v145
    %s148 = scalar_lea.vmem [#allocation0], 65
    %v149 = vld [vmem:[%s148] ss:$8 sm:$0xf]
    %s150 = scalar_lea.vmem [#allocation0], 65
    %v151 = vld [vmem:[%s150] ss:$8 sm:$0xf0]
    %vm152 = vcmask 1047556
    %v153 = vsel %vm152, %v151, %v149
    %154 = vrot.lane.b32.xlu0 %v153, 32
    %v155 = vpop.permute.xlu0 %154
    %vm156 = vcmask 523520
    %s157 = scalar_lea.vmem %s1, 8
    %158 = vst.msk [vmem:[%s157] sm:$0xff] %vm156, %v155

// kernel: rlhf_flow_llama_math_rm_forward.3
$region0: #{rlhf_flow_llama_math_rm_forward.3}
  #allocation0 [shape = 'u32[]', space=smem, size = 0x4, offset = 0x4, fixed_abs, tag = 'smem constant byte address 0x4 - core index']
  #allocation1 [shape = 'u32[144,128]{1,0:T(1,128)}', space=vmem, size = 0x12000, scoped, tag = 'internal scratch']
  %s0 = inlined_call_operand.vmem [shape: f32[2,128], index: 0, kind: input, shape index: {}]
  %s1 = inlined_call_operand.vmem [shape: f32[1,128], index: 1, kind: input, shape index: {}]
  %s2 = inlined_call_operand.vmem [shape: bf16[128,128], index: 2, kind: input, shape index: {}]
  %s3 = inlined_call_operand.vmem [shape: f32[2,1], index: 3, kind: output, shape index: {}]
  %s4 = sld [smem:[#allocation0]]
  $region22: #{rlhf_flow_llama_math_rm_forward.3} parent=0
    _
  %s6 = ssub.s32 1, %s4
  %s7 = scalar_select 0, %s6, %s4
  // Predicated region
  $region2: #{rlhf_flow_llama_math_rm_forward.3} parent=0 // pred_check
    _
  $region3: #{rlhf_flow_llama_math_rm_forward.3} parent=0 // pred_check_branch
    %9 = sbr.rel (0) target = $region5
  $region4: #{rlhf_flow_llama_math_rm_forward.3} parent=0 // pred_region
    _
  $region5: #{rlhf_flow_llama_math_rm_forward.3} parent=0 // pred_fallthru
    _
  // Predicated region
  $region6: #{rlhf_flow_llama_math_rm_forward.3} parent=0 // pred_check
    _
  $region7: #{rlhf_flow_llama_math_rm_forward.3} parent=0 // pred_check_branch
    %11 = sbr.rel (0) target = $region9
  $region8: #{rlhf_flow_llama_math_rm_forward.3} parent=0 // pred_region
    _
  $region9: #{rlhf_flow_llama_math_rm_forward.3} parent=0 // pred_fallthru
    _
  // Predicated region
  $region10: #{rlhf_flow_llama_math_rm_forward.3} parent=0 // pred_check
    _
  $region11: #{rlhf_flow_llama_math_rm_forward.3} parent=0 // pred_check_branch
    %13 = sbr.rel (0) target = $region13
  $region12: #{rlhf_flow_llama_math_rm_forward.3} parent=0 // pred_region
    _
  $region13: #{rlhf_flow_llama_math_rm_forward.3} parent=0 // pred_fallthru
    _
  %v15 = vld [vmem:[%s0] sm:$0x3]
  %v16 = vld [vmem:[%s1] sm:$0x1]
  %v17 = vmul.f32 %v15, %v15
  %vm18 = vcmask 1041408
  %v19 = vsel %vm18, %v17, 0.0
  %20 = vadd.xlane.f32.xlu0 %v19
  %v21 = vpop.xlane.xlu0 %20
  %v22 = vrcp.pop 128.0
  %v23 = vmul.f32 %v21, %v22
  %v24 = vadd.f32 %v23, 1e-06
  %v25 = vrsqrt.pop %v24
  %v26 = vmul.f32 %v15, %v25
  %v28 = vlaneseq
  %v29 = vshrl.u32 %v28, 7
  %v30 = vsub.s32 0, %v29
  %v31 = vrot.slane %v16, %v30
  %v33 = vmul.f32 %v26, %v31
  %v34 = vpack.c.bf16 %v33, %v33
  %v35 = vld [vmem:[%s2] sm:$0xf]
  %v36 = vld [vmem:[%s2 + $0x4] sm:$0xf]
  %v37 = vld [vmem:[%s2 + $0x8] sm:$0xf]
  %v38 = vld [vmem:[%s2 + $0xc] sm:$0xf]
  %v39 = vld [vmem:[%s2 + $0x10] sm:$0xf]
  %v40 = vld [vmem:[%s2 + $0x14] sm:$0xf]
  %v41 = vld [vmem:[%s2 + $0x18] sm:$0xf]
  %v42 = vld [vmem:[%s2 + $0x1c] sm:$0xf]
  %v43 = vld [vmem:[%s2 + $0x20] sm:$0xf]
  %v44 = vld [vmem:[%s2 + $0x24] sm:$0xf]
  %v45 = vld [vmem:[%s2 + $0x28] sm:$0xf]
  %v46 = vld [vmem:[%s2 + $0x2c] sm:$0xf]
  %v47 = vld [vmem:[%s2 + $0x30] sm:$0xf]
  %v48 = vld [vmem:[%s2 + $0x34] sm:$0xf]
  %v49 = vld [vmem:[%s2 + $0x38] sm:$0xf]
  %v50 = vld [vmem:[%s2 + $0x3c] sm:$0xf]
  %v67 = vunpack.c.l.b16 %v35
  %v68 = vunpack.c.l.b16 %v36
  %v69 = vunpack.c.l.b16 %v37
  %v70 = vunpack.c.l.b16 %v38
  %v71 = vunpack.c.l.b16 %v39
  %v72 = vunpack.c.l.b16 %v40
  %v73 = vunpack.c.l.b16 %v41
  %v74 = vunpack.c.l.b16 %v42
  %v75 = vunpack.c.l.b16 %v43
  %v76 = vunpack.c.l.b16 %v44
  %v77 = vunpack.c.l.b16 %v45
  %v78 = vunpack.c.l.b16 %v46
  %v79 = vunpack.c.l.b16 %v47
  %v80 = vunpack.c.l.b16 %v48
  %v81 = vunpack.c.l.b16 %v49
  %v82 = vunpack.c.l.b16 %v50
  %v83 = vpack.c.b16 %v68, %v67
  %v84 = vpack.c.b16 %v70, %v69
  %v85 = vpack.c.b16 %v72, %v71
  %v86 = vpack.c.b16 %v74, %v73
  %v87 = vpack.c.b16 %v76, %v75
  %v88 = vpack.c.b16 %v78, %v77
  %v89 = vpack.c.b16 %v80, %v79
  %v90 = vpack.c.b16 %v82, %v81
  %99 = vmatprep.subr.bf16.mxu0 0
  %100 = vmatpush1.bf16.msra.mxu0 %v90
  %101 = vmatprep.subr.bf16.mxu0 0
  %102 = vmatpush1.bf16.msra.mxu0 %v89
  %103 = vmatprep.subr.bf16.mxu0 0
  %104 = vmatpush1.bf16.msra.mxu0 %v88
  %105 = vmatprep.subr.bf16.mxu0 0
  %106 = vmatpush1.bf16.msra.mxu0 %v87
  %107 = vmatprep.subr.bf16.mxu0 0
  %108 = vmatpush1.bf16.msra.mxu0 %v86
  %109 = vmatprep.subr.bf16.mxu0 0
  %110 = vmatpush1.bf16.msra.mxu0 %v85
  %111 = vmatprep.subr.bf16.mxu0 0
  %112 = vmatpush1.bf16.msra.mxu0 %v84
  %113 = vmatprep.subr.bf16.mxu0 0
  %114 = vmatpush1.bf16.msra.mxu0 %v83
  %115 = vmatprep.subr.bf16.mxu0 0
  %116 = vmatpush2.bf16.msra.mxu0 0
  %117 = vmatprep.subr.bf16.mxu0 0
  %118 = vmatpush2.bf16.msra.mxu0 0
  %119 = vmatprep.subr.bf16.mxu0 0
  %120 = vmatpush2.bf16.msra.mxu0 0
  %121 = vmatprep.subr.bf16.mxu0 0
  %122 = vmatpush2.bf16.msra.mxu0 0
  %123 = vmatprep.subr.bf16.mxu0 0
  %124 = vmatpush2.bf16.msra.mxu0 0
  %125 = vmatprep.subr.bf16.mxu0 0
  %126 = vmatpush2.bf16.msra.mxu0 0
  %127 = vmatprep.subr.bf16.mxu0 0
  %128 = vmatpush2.bf16.msra.mxu0 0
  %129 = vmatprep.subr.bf16.mxu0 0
  %130 = vmatpush2.bf16.msra.mxu0 0
  %131 = vmatprep.mubr.bf16.mxu0 0
  %132 = vmatmul.mubr.bf16.gmra.mxu0 %v34
  %v133 = vpop.f32.mrf.mxu0
  %v134 = vadd.f32 0.0, %v133
  %v135 = vpop.f32.mrf.mxu0
  %v136 = vpop.f32.mrf.mxu0
  %v137 = vpop.f32.mrf.mxu0
  %138 = vdwg.mxu0
  %140 = vrot.lane.b32.xlu0 %v134, 127
  %v141 = vpop.permute.xlu0 %140
  %v143 = vmax.f32 %v134, %v141
  %v144 = vsub.f32 %v134, %v143
  %v145 = vmul.f32 %v144, 1.442695
  %v146 = vpow.pop %v145
  %148 = vrot.lane.b32.xlu0 %v143, 1
  %v149 = vpop.permute.xlu0 %148
  %v151 = vsub.f32 %v134, %v149
  %v152 = vmul.f32 %v151, 1.442695
  %v153 = vpow.pop %v152
  %155 = vrot.lane.b32.xlu0 %v153, 127
  %v156 = vpop.permute.xlu0 %155
  %v158 = vadd.f32 %v146, %v156
  %v159 = vrcp.pop %v158
  %v160 = vmul.f32 %v146, %v159
  %vm161 = vcmask 1024
  %162 = vst.msk [vmem:[%s3] sm:$0x3] %vm161, %v160
  // Predicated region
  $region14: #{rlhf_flow_llama_math_rm_forward.3} parent=0 // pred_check
    _
  $region15: #{rlhf_flow_llama_math_rm_forward.3} parent=0 // pred_check_branch
    %164 = sbr.rel (0) target = $region17
  $region16: #{rlhf_flow_llama_math_rm_forward.3} parent=0 // pred_region
    _
  $region17: #{rlhf_flow_llama_math_rm_forward.3} parent=0 // pred_fallthru
    _
  // Predicated region
  $region18: #{rlhf_flow_llama_math_rm_forward.3} parent=0 // pred_check
    _
  $region19: #{rlhf_flow_llama_math_rm_forward.3} parent=0 // pred_check_branch
    %166 = sbr.rel (0) target = $region21
  $region20: #{rlhf_flow_llama_math_rm_forward.3} parent=0 // pred_region
    _
  $region21: #{rlhf_flow_llama_math_rm_forward.3} parent=0 // pred_fallthru
    _

// kernel: rlhf_flow_llama_math_rm_forward.2
$region0: #{rlhf_flow_llama_math_rm_forward.2}
  #allocation0 [shape = 'u32[]', space=smem, size = 0x4, offset = 0x4, fixed_abs, tag = 'smem constant byte address 0x4 - core index']
  #allocation1 [shape = 'u32[144,128]{1,0:T(1,128)}', space=vmem, size = 0x12000, scoped, tag = 'internal scratch']
  %s0 = inlined_call_operand.vmem [shape: f32[2,8,128], index: 0, kind: input, shape index: {}]
  %s1 = inlined_call_operand.vmem [shape: f32[2,8,128], index: 1, kind: input, shape index: {}]
  %s2 = inlined_call_operand.vmem [shape: f32[2,8,128], index: 2, kind: input, shape index: {}]
  %s3 = inlined_call_operand.vmem [shape: f32[2,1,128], index: 3, kind: input, shape index: {}]
  %s4 = inlined_call_operand.hbm [shape: bf16[2,128,384], index: 4, kind: input, shape index: {}]
  %s5 = inlined_call_operand.hbm [shape: bf16[2,128,128], index: 5, kind: input, shape index: {}]
  %s6 = inlined_call_operand.vmem [shape: f32[2,1,128], index: 6, kind: input, shape index: {}]
  %s7 = inlined_call_operand.vmem [shape: bf16[2,128,512], index: 7, kind: input, shape index: {}]
  %s8 = inlined_call_operand.hbm [shape: bf16[2,256,128], index: 8, kind: input, shape index: {}]
  %s9 = inlined_call_operand.vmem [shape: f32[2,8,128], index: 9, kind: output, shape index: {}]
  %s10 = sld [smem:[#allocation0]]
  $region85: #{rlhf_flow_llama_math_rm_forward.2} parent=0
    _
  %s12 = ssub.s32 1, %s10
  %s13 = scalar_select 0, %s12, %s10
  $region1: #{rlhf_flow_llama_math_rm_forward.2} parent=0
    #allocation2 [shape = 'u8[196608]{0}', space=vmem, size = 0x30000, scoped, tag = 'input window, operand 4']
    #allocation3 [shape = 's32[2]{0}', space=sflag, size = 0x8, scoped, tag = 'scoped memory for rlhf_flow_llama_math_rm_forward.2']
    #allocation4 [shape = 'u8[65536]{0}', space=vmem, size = 0x10000, scoped, tag = 'input window, operand 5']
    #allocation5 [shape = 's32[2]{0}', space=sflag, size = 0x8, scoped, tag = 'scoped memory for rlhf_flow_llama_math_rm_forward.2']
    #allocation6 [shape = 'u8[131072]{0}', space=vmem, size = 0x20000, scoped, tag = 'input window, operand 8']
    %14 = vsyncpa [#allocation3], 0
    %s15 = scalar_lea.sflag [#allocation3], 1
    %16 = vsyncpa %s15, 0
    %17 = vsyncpa [#allocation5], 0
    %s18 = scalar_lea.sflag [#allocation5], 1
    %19 = vsyncpa %s18, 0
    loop: start=0, step=1, limit=6
    $region2: #{rlhf_flow_llama_math_rm_forward.2} parent=1 // loop_pre_header
      _
    $region3: #{rlhf_flow_llama_math_rm_forward.2} parent=1 // loop_header
      %s21 = sphi 0, %s25
      %p22 = scmp.ge.s32.totalorder %s21, 6
      %s28 = sphi 0, %s40
      %s29 = sphi 0, %s36
      %s30 = sphi 0, %s28
      %s31 = sphi 0, %s29
      %s32 = sphi 0, %s30
      %s33 = sphi 0, %s31
      %s43 = sphi 0, %s45
      %s46 = sphi 0, %s43
      %s47 = sphi 0, %s46
      %s63 = sphi 0, %s47
      %s69 = sphi 0, %s71
      %s72 = sphi 0, %s69
      %s73 = sphi 0, %s72
      %s89 = sphi 0, %s73
      %s95 = sphi 0, %s97
      %s98 = sphi 0, %s95
      %s99 = sphi 0, %s98
      %s115 = sphi 0, %s99
      %s121 = sphi 0, %s123
      %s124 = sphi 0, %s121
      %s125 = sphi 0, %s124
      %s141 = sphi 0, %s125
      %s147 = sphi 0, %s149
      %s150 = sphi 0, %s147
      %s151 = sphi 0, %s150
      %s167 = sphi 0, %s151
      %s173 = sphi 0, %s175
      %s176 = sphi 0, %s173
      %s177 = sphi 0, %s176
      %s193 = sphi 0, %s177
      %s199 = sphi 0, %s201
      %s202 = sphi 0, %s199
      %s203 = sphi 0, %s202
      %s219 = sphi 0, %s203
      %s225 = sphi 0, %s227
      %s228 = sphi 0, %s225
      %s229 = sphi 0, %s228
      %s245 = sphi 0, %s229
      %s251 = sphi 0, %s253
      %s254 = sphi 0, %s251
      %s255 = sphi 0, %s254
      %s271 = sphi 0, %s255
      %s277 = sphi 0, %s279
      %s280 = sphi 0, %s277
      %s281 = sphi 0, %s280
      %s297 = sphi 0, %s281
    $region4: #{rlhf_flow_llama_math_rm_forward.2} parent=1 // loop_header_branch
      %24 = sbr.rel (%p22) target = $region8
    $region5: #{rlhf_flow_llama_math_rm_forward.2} parent=1 // loop_body
      %s26 = ssub.s32 %s21, 1
      %s27 = ssub.s32 %s21, 2
      %s34 = sadd.s32 1, %s29
      %p35 = scmp.ge.s32.totalorder %s34, 2
      %s36 = scalar_select %p35, 0, %s34
      %s37 = sadd.s32 1, %s28
      %s38 = scalar_select %p35, %s37, %s28
      %p39 = scmp.ge.s32.totalorder %s38, 2
      %s40 = scalar_select %p39, 0, %s38
      %s41 = ssub.s32 %s28, %s40
      %p42 = scmp.eq.s32.totalorder %s41, 0
      %s44 = sadd.s32 %s43, 1
      %s45 = scalar_select %p42, %s43, %s44
      %p48 = pneg %p42
      %p49 = scmp.eq.s32.totalorder %s21, 3
      %p50 = por %p48, %p49
      %p51 = scmp.ne.s32.totalorder %s43, %s46
      %p52 = scmp.eq.s32.totalorder %s21, 0
      %p53 = por %p51, %p52
      %p54 = scmp.ne.s32.totalorder %s43, %s46
      %p55 = scmp.eq.s32.totalorder %s26, 3
      %p56 = por %p54, %p55
      %p57 = scmp.ne.s32.totalorder %s46, %s47
      %p58 = scmp.eq.s32.totalorder %s26, 0
      %p59 = por %p57, %p58
      %p60 = scmp.ne.s32.totalorder %s46, %s47
      %p61 = scmp.eq.s32.totalorder %s27, 3
      %p62 = por %p60, %p61
      %p64 = scmp.ne.s32.totalorder %s47, %s63
      %p65 = scmp.eq.s32.totalorder %s27, 0
      %p66 = por %p64, %p65
      %s67 = ssub.s32 %s28, %s40
      %p68 = scmp.eq.s32.totalorder %s67, 0
      %s70 = sadd.s32 %s69, 1
      %s71 = scalar_select %p68, %s69, %s70
      %p74 = pneg %p68
      %p75 = scmp.eq.s32.totalorder %s21, 3
      %p76 = por %p74, %p75
      %p77 = scmp.ne.s32.totalorder %s69, %s72
      %p78 = scmp.eq.s32.totalorder %s21, 0
      %p79 = por %p77, %p78
      %p80 = scmp.ne.s32.totalorder %s69, %s72
      %p81 = scmp.eq.s32.totalorder %s26, 3
      %p82 = por %p80, %p81
      %p83 = scmp.ne.s32.totalorder %s72, %s73
      %p84 = scmp.eq.s32.totalorder %s26, 0
      %p85 = por %p83, %p84
      %p86 = scmp.ne.s32.totalorder %s72, %s73
      %p87 = scmp.eq.s32.totalorder %s27, 3
      %p88 = por %p86, %p87
      %p90 = scmp.ne.s32.totalorder %s73, %s89
      %p91 = scmp.eq.s32.totalorder %s27, 0
      %p92 = por %p90, %p91
      %s93 = ssub.s32 %s28, %s40
      %p94 = scmp.eq.s32.totalorder %s93, 0
      %s96 = sadd.s32 %s95, 1
      %s97 = scalar_select %p94, %s95, %s96
      %p100 = pneg %p94
      %p101 = scmp.eq.s32.totalorder %s21, 3
      %p102 = por %p100, %p101
      %p103 = scmp.ne.s32.totalorder %s95, %s98
      %p104 = scmp.eq.s32.totalorder %s21, 0
      %p105 = por %p103, %p104
      %p106 = scmp.ne.s32.totalorder %s95, %s98
      %p107 = scmp.eq.s32.totalorder %s26, 3
      %p108 = por %p106, %p107
      %p109 = scmp.ne.s32.totalorder %s98, %s99
      %p110 = scmp.eq.s32.totalorder %s26, 0
      %p111 = por %p109, %p110
      %p112 = scmp.ne.s32.totalorder %s98, %s99
      %p113 = scmp.eq.s32.totalorder %s27, 3
      %p114 = por %p112, %p113
      %p116 = scmp.ne.s32.totalorder %s99, %s115
      %p117 = scmp.eq.s32.totalorder %s27, 0
      %p118 = por %p116, %p117
      %s119 = ssub.s32 %s29, %s36
      %p120 = scmp.eq.s32.totalorder %s119, 0
      %s122 = sadd.s32 %s121, 1
      %s123 = scalar_select %p120, %s121, %s122
      %p126 = pneg %p120
      %p127 = scmp.eq.s32.totalorder %s21, 3
      %p128 = por %p126, %p127
      %p129 = scmp.ne.s32.totalorder %s121, %s124
      %p130 = scmp.eq.s32.totalorder %s21, 0
      %p131 = por %p129, %p130
      %p132 = scmp.ne.s32.totalorder %s121, %s124
      %p133 = scmp.eq.s32.totalorder %s26, 3
      %p134 = por %p132, %p133
      %p135 = scmp.ne.s32.totalorder %s124, %s125
      %p136 = scmp.eq.s32.totalorder %s26, 0
      %p137 = por %p135, %p136
      %p138 = scmp.ne.s32.totalorder %s124, %s125
      %p139 = scmp.eq.s32.totalorder %s27, 3
      %p140 = por %p138, %p139
      %p142 = scmp.ne.s32.totalorder %s125, %s141
      %p143 = scmp.eq.s32.totalorder %s27, 0
      %p144 = por %p142, %p143
      %s145 = ssub.s32 %s29, %s36
      %p146 = scmp.eq.s32.totalorder %s145, 0
      %s148 = sadd.s32 %s147, 1
      %s149 = scalar_select %p146, %s147, %s148
      %p152 = pneg %p146
      %p153 = scmp.eq.s32.totalorder %s21, 3
      %p154 = por %p152, %p153
      %p155 = scmp.ne.s32.totalorder %s147, %s150
      %p156 = scmp.eq.s32.totalorder %s21, 0
      %p157 = por %p155, %p156
      %p158 = scmp.ne.s32.totalorder %s147, %s150
      %p159 = scmp.eq.s32.totalorder %s26, 3
      %p160 = por %p158, %p159
      %p161 = scmp.ne.s32.totalorder %s150, %s151
      %p162 = scmp.eq.s32.totalorder %s26, 0
      %p163 = por %p161, %p162
      %p164 = scmp.ne.s32.totalorder %s150, %s151
      %p165 = scmp.eq.s32.totalorder %s27, 3
      %p166 = por %p164, %p165
      %p168 = scmp.ne.s32.totalorder %s151, %s167
      %p169 = scmp.eq.s32.totalorder %s27, 0
      %p170 = por %p168, %p169
      %s171 = ssub.s32 %s29, %s36
      %p172 = scmp.eq.s32.totalorder %s171, 0
      %s174 = sadd.s32 %s173, 1
      %s175 = scalar_select %p172, %s173, %s174
      %p178 = pneg %p172
      %p179 = scmp.eq.s32.totalorder %s21, 3
      %p180 = por %p178, %p179
      %p181 = scmp.ne.s32.totalorder %s173, %s176
      %p182 = scmp.eq.s32.totalorder %s21, 0
      %p183 = por %p181, %p182
      %p184 = scmp.ne.s32.totalorder %s173, %s176
      %p185 = scmp.eq.s32.totalorder %s26, 3
      %p186 = por %p184, %p185
      %p187 = scmp.ne.s32.totalorder %s176, %s177
      %p188 = scmp.eq.s32.totalorder %s26, 0
      %p189 = por %p187, %p188
      %p190 = scmp.ne.s32.totalorder %s176, %s177
      %p191 = scmp.eq.s32.totalorder %s27, 3
      %p192 = por %p190, %p191
      %p194 = scmp.ne.s32.totalorder %s177, %s193
      %p195 = scmp.eq.s32.totalorder %s27, 0
      %p196 = por %p194, %p195
      %s197 = ssub.s32 %s29, %s36
      %p198 = scmp.eq.s32.totalorder %s197, 0
      %s200 = sadd.s32 %s199, 1
      %s201 = scalar_select %p198, %s199, %s200
      %p204 = pneg %p198
      %p205 = scmp.eq.s32.totalorder %s21, 3
      %p206 = por %p204, %p205
      %p207 = scmp.ne.s32.totalorder %s199, %s202
      %p208 = scmp.eq.s32.totalorder %s21, 0
      %p209 = por %p207, %p208
      %p210 = scmp.ne.s32.totalorder %s199, %s202
      %p211 = scmp.eq.s32.totalorder %s26, 3
      %p212 = por %p210, %p211
      %p213 = scmp.ne.s32.totalorder %s202, %s203
      %p214 = scmp.eq.s32.totalorder %s26, 0
      %p215 = por %p213, %p214
      %p216 = scmp.ne.s32.totalorder %s202, %s203
      %p217 = scmp.eq.s32.totalorder %s27, 3
      %p218 = por %p216, %p217
      %p220 = scmp.ne.s32.totalorder %s203, %s219
      %p221 = scmp.eq.s32.totalorder %s27, 0
      %p222 = por %p220, %p221
      %s223 = ssub.s32 %s29, %s36
      %p224 = scmp.eq.s32.totalorder %s223, 0
      %s226 = sadd.s32 %s225, 1
      %s227 = scalar_select %p224, %s225, %s226
      %p230 = pneg %p224
      %p231 = scmp.eq.s32.totalorder %s21, 3
      %p232 = por %p230, %p231
      %p233 = scmp.ne.s32.totalorder %s225, %s228
      %p234 = scmp.eq.s32.totalorder %s21, 0
      %p235 = por %p233, %p234
      %p236 = scmp.ne.s32.totalorder %s225, %s228
      %p237 = scmp.eq.s32.totalorder %s26, 3
      %p238 = por %p236, %p237
      %p239 = scmp.ne.s32.totalorder %s228, %s229
      %p240 = scmp.eq.s32.totalorder %s26, 0
      %p241 = por %p239, %p240
      %p242 = scmp.ne.s32.totalorder %s228, %s229
      %p243 = scmp.eq.s32.totalorder %s27, 3
      %p244 = por %p242, %p243
      %p246 = scmp.ne.s32.totalorder %s229, %s245
      %p247 = scmp.eq.s32.totalorder %s27, 0
      %p248 = por %p246, %p247
      %s249 = ssub.s32 %s29, %s36
      %p250 = scmp.eq.s32.totalorder %s249, 0
      %s252 = sadd.s32 %s251, 1
      %s253 = scalar_select %p250, %s251, %s252
      %p256 = pneg %p250
      %p257 = scmp.eq.s32.totalorder %s21, 3
      %p258 = por %p256, %p257
      %p259 = scmp.ne.s32.totalorder %s251, %s254
      %p260 = scmp.eq.s32.totalorder %s21, 0
      %p261 = por %p259, %p260
      %p262 = scmp.ne.s32.totalorder %s251, %s254
      %p263 = scmp.eq.s32.totalorder %s26, 3
      %p264 = por %p262, %p263
      %p265 = scmp.ne.s32.totalorder %s254, %s255
      %p266 = scmp.eq.s32.totalorder %s26, 0
      %p267 = por %p265, %p266
      %p268 = scmp.ne.s32.totalorder %s254, %s255
      %p269 = scmp.eq.s32.totalorder %s27, 3
      %p270 = por %p268, %p269
      %p272 = scmp.ne.s32.totalorder %s255, %s271
      %p273 = scmp.eq.s32.totalorder %s27, 0
      %p274 = por %p272, %p273
      %s275 = ssub.s32 %s28, %s40
      %p276 = scmp.eq.s32.totalorder %s275, 0
      %s278 = sadd.s32 %s277, 1
      %s279 = scalar_select %p276, %s277, %s278
      %p282 = pneg %p276
      %p283 = scmp.eq.s32.totalorder %s21, 3
      %p284 = por %p282, %p283
      %p285 = scmp.ne.s32.totalorder %s277, %s280
      %p286 = scmp.eq.s32.totalorder %s21, 0
      %p287 = por %p285, %p286
      %p288 = scmp.ne.s32.totalorder %s277, %s280
      %p289 = scmp.eq.s32.totalorder %s26, 3
      %p290 = por %p288, %p289
      %p291 = scmp.ne.s32.totalorder %s280, %s281
      %p292 = scmp.eq.s32.totalorder %s26, 0
      %p293 = por %p291, %p292
      %p294 = scmp.ne.s32.totalorder %s280, %s281
      %p295 = scmp.eq.s32.totalorder %s27, 3
      %p296 = por %p294, %p295
      %p298 = scmp.ne.s32.totalorder %s281, %s297
      %p299 = scmp.eq.s32.totalorder %s27, 0
      %p300 = por %p298, %p299
      %p301 = scmp.le.s32.totalorder 1, %s21
      %p302 = scmp.lt.s32.totalorder %s21, 5
      %p303 = pnand %p301, %p302
      %p304 = pneg %p303
      // Predicated region
      $region9: #{rlhf_flow_llama_math_rm_forward.2} parent=5 // pred_check
        _
      $region10: #{rlhf_flow_llama_math_rm_forward.2} parent=5 // pred_check_branch
        %306 = sbr.rel (%p303) target = $region12
      $region11: #{rlhf_flow_llama_math_rm_forward.2} parent=5 // pred_region
        %s307 = ssub.s32 %s21, 1
      $region12: #{rlhf_flow_llama_math_rm_forward.2} parent=5 // pred_fallthru
        _
      %p308 = scmp.lt.s32.totalorder %s21, 4
      // Predicated region
      $region13: #{rlhf_flow_llama_math_rm_forward.2} parent=5 // pred_check
        %p309 = pneg %p308
      $region14: #{rlhf_flow_llama_math_rm_forward.2} parent=5 // pred_check_branch
        %311 = sbr.rel (%p309) target = $region16
      $region15: #{rlhf_flow_llama_math_rm_forward.2} parent=5 // pred_region
        // Predicated region
        $region17: #{rlhf_flow_llama_math_rm_forward.2} parent=15 // pred_check
          %p312 = pneg %p53
        $region18: #{rlhf_flow_llama_math_rm_forward.2} parent=15 // pred_check_branch
          %314 = sbr.rel (%p312) target = $region20
        $region19: #{rlhf_flow_llama_math_rm_forward.2} parent=15 // pred_region
          %p315 = scmp.lt.s32.totalorder %s28, 1
          %s316 = scalar_select %p315, %s28, 1
          %s317 = smul.addr %s316, 8
          %s318 = scalar_lea.vmem %s0, %s317
        $region20: #{rlhf_flow_llama_math_rm_forward.2} parent=15 // pred_fallthru
          _
        // Predicated region
        $region21: #{rlhf_flow_llama_math_rm_forward.2} parent=15 // pred_check
          %p319 = pneg %p79
        $region22: #{rlhf_flow_llama_math_rm_forward.2} parent=15 // pred_check_branch
          %321 = sbr.rel (%p319) target = $region24
        $region23: #{rlhf_flow_llama_math_rm_forward.2} parent=15 // pred_region
          %p322 = scmp.lt.s32.totalorder %s28, 1
          %s323 = scalar_select %p322, %s28, 1
          %s324 = smul.addr %s323, 8
          %s325 = scalar_lea.vmem %s1, %s324
        $region24: #{rlhf_flow_llama_math_rm_forward.2} parent=15 // pred_fallthru
          _
        // Predicated region
        $region25: #{rlhf_flow_llama_math_rm_forward.2} parent=15 // pred_check
          %p326 = pneg %p105
        $region26: #{rlhf_flow_llama_math_rm_forward.2} parent=15 // pred_check_branch
          %328 = sbr.rel (%p326) target = $region28
        $region27: #{rlhf_flow_llama_math_rm_forward.2} parent=15 // pred_region
          %p329 = scmp.lt.s32.totalorder %s28, 1
          %s330 = scalar_select %p329, %s28, 1
          %s331 = smul.addr %s330, 8
          %s332 = scalar_lea.vmem %s2, %s331
        $region28: #{rlhf_flow_llama_math_rm_forward.2} parent=15 // pred_fallthru
          _
        // Predicated region
        $region29: #{rlhf_flow_llama_math_rm_forward.2} parent=15 // pred_check
          %p333 = pneg %p131
        $region30: #{rlhf_flow_llama_math_rm_forward.2} parent=15 // pred_check_branch
          %335 = sbr.rel (%p333) target = $region32
        $region31: #{rlhf_flow_llama_math_rm_forward.2} parent=15 // pred_region
          %p336 = scmp.lt.s32.totalorder %s29, 1
          %s337 = scalar_select %p336, %s29, 1
          %s338 = scalar_lea.vmem %s3, %s337
        $region32: #{rlhf_flow_llama_math_rm_forward.2} parent=15 // pred_fallthru
          _
        // Predicated region
        $region33: #{rlhf_flow_llama_math_rm_forward.2} parent=15 // pred_check
          %p339 = pneg %p157
        $region34: #{rlhf_flow_llama_math_rm_forward.2} parent=15 // pred_check_branch
          %341 = sbr.rel (%p339) target = $region36
        $region35: #{rlhf_flow_llama_math_rm_forward.2} parent=15 // pred_region
          %s342 = sand.u32 %s147, 1
          %s343 = scalar_lea.sflag [#allocation3], %s342
          %s344 = sand.u32 %s147, 1
          %s345 = smul.addr %s344, 192
          %s346 = scalar_lea.vmem [#allocation2], %s345
          %s348 = ssub.s32 3072, 3072
          %349 = vsyncadd %s343, %s348
          %s350 = smul.addr %s29, 48
          %s351 = smul.addr %s350, 64
          %s352 = scalar_lea.hbm %s4, %s351
          %s353 = sshll.u32 %s346, 4
          %s354 = int_to_ptr.vmem [resolvable:$true] %s353
          %359 = dma.hbm_to_vmem [thread:$0]  %s352, 3072, %s354, %s343, 192, 192, 12
        $region36: #{rlhf_flow_llama_math_rm_forward.2} parent=15 // pred_fallthru
          _
        // Predicated region
        $region37: #{rlhf_flow_llama_math_rm_forward.2} parent=15 // pred_check
          %p360 = pneg %p183
        $region38: #{rlhf_flow_llama_math_rm_forward.2} parent=15 // pred_check_branch
          %362 = sbr.rel (%p360) target = $region40
        $region39: #{rlhf_flow_llama_math_rm_forward.2} parent=15 // pred_region
          %s363 = sand.u32 %s21, 1
          %s364 = scalar_lea.sflag [#allocation5], %s363
          %s365 = sand.u32 %s173, 1
          %s366 = smul.addr %s365, 64
          %s367 = scalar_lea.vmem [#allocation4], %s366
          %s369 = ssub.s32 1024, 1024
          %370 = vsyncadd %s364, %s369
          %s371 = smul.addr %s29, 16
          %s372 = smul.addr %s371, 64
          %s373 = scalar_lea.hbm %s5, %s372
          %s374 = sshll.u32 %s367, 4
          %s375 = int_to_ptr.vmem [resolvable:$true] %s374
          %380 = dma.hbm_to_vmem [thread:$0]  %s373, 1024, %s375, %s364, 64, 64, 4
        $region40: #{rlhf_flow_llama_math_rm_forward.2} parent=15 // pred_fallthru
          _
        // Predicated region
        $region41: #{rlhf_flow_llama_math_rm_forward.2} parent=15 // pred_check
          %p381 = pneg %p209
        $region42: #{rlhf_flow_llama_math_rm_forward.2} parent=15 // pred_check_branch
          %383 = sbr.rel (%p381) target = $region44
        $region43: #{rlhf_flow_llama_math_rm_forward.2} parent=15 // pred_region
          %p384 = scmp.lt.s32.totalorder %s29, 1
          %s385 = scalar_select %p384, %s29, 1
          %s386 = scalar_lea.vmem %s6, %s385
        $region44: #{rlhf_flow_llama_math_rm_forward.2} parent=15 // pred_fallthru
          _
        // Predicated region
        $region45: #{rlhf_flow_llama_math_rm_forward.2} parent=15 // pred_check
          %p387 = pneg %p235
        $region46: #{rlhf_flow_llama_math_rm_forward.2} parent=15 // pred_check_branch
          %389 = sbr.rel (%p387) target = $region48
        $region47: #{rlhf_flow_llama_math_rm_forward.2} parent=15 // pred_region
          %p390 = scmp.lt.s32.totalorder %s29, 1
          %s391 = scalar_select %p390, %s29, 1
          %s392 = smul.addr %s391, 64
          %s393 = smul.addr %s392, 4
          %s394 = scalar_lea.vmem %s7, %s393
        $region48: #{rlhf_flow_llama_math_rm_forward.2} parent=15 // pred_fallthru
          _
        // Predicated region
        $region49: #{rlhf_flow_llama_math_rm_forward.2} parent=15 // pred_check
          %p395 = pneg %p261
        $region50: #{rlhf_flow_llama_math_rm_forward.2} parent=15 // pred_check_branch
          %397 = sbr.rel (%p395) target = $region52
        $region51: #{rlhf_flow_llama_math_rm_forward.2} parent=15 // pred_region
          %s398 = sand.u32 %s21, 1
          %s399 = scalar_lea.sflag [#allocation5], %s398
          %s400 = sand.u32 %s251, 1
          %s401 = smul.addr %s400, 128
          %s402 = scalar_lea.vmem [#allocation6], %s401
          %s404 = ssub.s32 2048, 2048
          %405 = vsyncadd %s399, %s404
          %s406 = smul.addr %s29, 32
          %s407 = smul.addr %s406, 64
          %s408 = scalar_lea.hbm %s8, %s407
          %s409 = sshll.u32 %s402, 4
          %s410 = int_to_ptr.vmem [resolvable:$true] %s409
          %415 = dma.hbm_to_vmem [thread:$0]  %s408, 2048, %s410, %s399, 64, 64, 4
        $region52: #{rlhf_flow_llama_math_rm_forward.2} parent=15 // pred_fallthru
          _
      $region16: #{rlhf_flow_llama_math_rm_forward.2} parent=5 // pred_fallthru
        _
      %p416 = scmp.le.s32.totalorder 1, %s21
      %p417 = scmp.lt.s32.totalorder %s21, 5
      %p418 = pnand %p416, %p417
      %p419 = pneg %p418
      // Predicated region
      $region53: #{rlhf_flow_llama_math_rm_forward.2} parent=5 // pred_check
        _
      $region54: #{rlhf_flow_llama_math_rm_forward.2} parent=5 // pred_check_branch
        %421 = sbr.rel (%p418) target = $region56
      $region55: #{rlhf_flow_llama_math_rm_forward.2} parent=5 // pred_region
        %s422 = ssub.s32 %s21, 1
        %s423 = sand.u32 %s150, 1
        %s424 = scalar_lea.sflag [#allocation3], %s423
        %s425 = sand.u32 %s150, 1
        %s426 = smul.addr %s425, 192
        %s427 = scalar_lea.vmem [#allocation2], %s426
        // Predicated region
        $region57: #{rlhf_flow_llama_math_rm_forward.2} parent=55 // pred_check
          %p428 = pneg %p163
        $region58: #{rlhf_flow_llama_math_rm_forward.2} parent=55 // pred_check_branch
          %430 = sbr.rel (%p428) target = $region60
        $region59: #{rlhf_flow_llama_math_rm_forward.2} parent=55 // pred_region
          %431 = dma.done %s424, 3072
        $region60: #{rlhf_flow_llama_math_rm_forward.2} parent=55 // pred_fallthru
          _
        %s432 = sand.u32 %s26, 1
        %s433 = scalar_lea.sflag [#allocation5], %s432
        %s434 = sand.u32 %s176, 1
        %s435 = smul.addr %s434, 64
        %s436 = scalar_lea.vmem [#allocation4], %s435
        // Predicated region
        $region61: #{rlhf_flow_llama_math_rm_forward.2} parent=55 // pred_check
          %p437 = pneg %p189
        $region62: #{rlhf_flow_llama_math_rm_forward.2} parent=55 // pred_check_branch
          %439 = sbr.rel (%p437) target = $region64
        $region63: #{rlhf_flow_llama_math_rm_forward.2} parent=55 // pred_region
          %440 = dma.done %s433, 1024
        $region64: #{rlhf_flow_llama_math_rm_forward.2} parent=55 // pred_fallthru
          _
        %s441 = sand.u32 %s26, 1
        %s442 = scalar_lea.sflag [#allocation5], %s441
        %s443 = sand.u32 %s254, 1
        %s444 = smul.addr %s443, 128
        %s445 = scalar_lea.vmem [#allocation6], %s444
        // Predicated region
        $region65: #{rlhf_flow_llama_math_rm_forward.2} parent=55 // pred_check
          %p446 = pneg %p267
        $region66: #{rlhf_flow_llama_math_rm_forward.2} parent=55 // pred_check_branch
          %448 = sbr.rel (%p446) target = $region68
        $region67: #{rlhf_flow_llama_math_rm_forward.2} parent=55 // pred_region
          %449 = dma.done %s442, 2048
        $region68: #{rlhf_flow_llama_math_rm_forward.2} parent=55 // pred_fallthru
          _
        %p450 = scmp.lt.s32.totalorder %s30, 1
        %s451 = scalar_select %p450, %s30, 1
        %s452 = smul.addr %s451, 8
        %s453 = scalar_lea.vmem %s0, %s452
        %p454 = pneg %p59
        %p455 = pneg %p56
        %p456 = scmp.lt.s32.totalorder %s30, 1
        %s457 = scalar_select %p456, %s30, 1
        %s458 = smul.addr %s457, 8
        %s459 = scalar_lea.vmem %s1, %s458
        %p460 = pneg %p85
        %p461 = pneg %p82
        %p462 = scmp.lt.s32.totalorder %s30, 1
        %s463 = scalar_select %p462, %s30, 1
        %s464 = smul.addr %s463, 8
        %s465 = scalar_lea.vmem %s2, %s464
        %p466 = pneg %p111
        %p467 = pneg %p108
        %p468 = scmp.lt.s32.totalorder %s31, 1
        %s469 = scalar_select %p468, %s31, 1
        %s470 = scalar_lea.vmem %s3, %s469
        %p471 = pneg %p137
        %p472 = pneg %p134
        %s473 = sand.u32 %s150, 1
        %s474 = scalar_lea.sflag [#allocation3], %s473
        %s475 = sand.u32 %s150, 1
        %s476 = smul.addr %s475, 192
        %s477 = scalar_lea.vmem [#allocation2], %s476
        %p478 = pneg %p163
        %p479 = pneg %p160
        %s480 = sand.u32 %s26, 1
        %s481 = scalar_lea.sflag [#allocation5], %s480
        %s482 = sand.u32 %s176, 1
        %s483 = smul.addr %s482, 64
        %s484 = scalar_lea.vmem [#allocation4], %s483
        %p485 = pneg %p189
        %p486 = pneg %p186
        %p487 = scmp.lt.s32.totalorder %s31, 1
        %s488 = scalar_select %p487, %s31, 1
        %s489 = scalar_lea.vmem %s6, %s488
        %p490 = pneg %p215
        %p491 = pneg %p212
        %p492 = scmp.lt.s32.totalorder %s31, 1
        %s493 = scalar_select %p492, %s31, 1
        %s494 = smul.addr %s493, 64
        %s495 = smul.addr %s494, 4
        %s496 = scalar_lea.vmem %s7, %s495
        %p497 = pneg %p241
        %p498 = pneg %p238
        %s499 = sand.u32 %s26, 1
        %s500 = scalar_lea.sflag [#allocation5], %s499
        %s501 = sand.u32 %s254, 1
        %s502 = smul.addr %s501, 128
        %s503 = scalar_lea.vmem [#allocation6], %s502
        %p504 = pneg %p267
        %p505 = pneg %p264
        %p506 = pneg %p293
        %p507 = pneg %p290
        %p508 = scmp.lt.s32.totalorder %s30, 1
        %s509 = scalar_select %p508, %s30, 1
        %s510 = smul.addr %s509, 8
        %s511 = scalar_lea.vmem %s9, %s510
        %p512 = scmp.lt.s32.totalorder %s30, 1
        %s513 = scalar_select %p512, %s30, 1
        %s514 = smul.addr %s513, 8
        %s515 = scalar_lea.vmem %s0, %s514
        %p516 = scmp.lt.s32.totalorder %s30, 1
        %s517 = scalar_select %p516, %s30, 1
        %s518 = smul.addr %s517, 8
        %s519 = scalar_lea.vmem %s1, %s518
        %p520 = scmp.lt.s32.totalorder %s30, 1
        %s521 = scalar_select %p520, %s30, 1
        %s522 = smul.addr %s521, 8
        %s523 = scalar_lea.vmem %s2, %s522
        %p524 = scmp.lt.s32.totalorder %s31, 1
        %s525 = scalar_select %p524, %s31, 1
        %s526 = scalar_lea.vmem %s3, %s525
        %p527 = scmp.lt.s32.totalorder %s31, 1
        %s528 = scalar_select %p527, %s31, 1
        %s529 = scalar_lea.vmem %s6, %s528
        %p530 = scmp.lt.s32.totalorder %s31, 1
        %s531 = scalar_select %p530, %s31, 1
        %s532 = smul.addr %s531, 64
        %s533 = smul.addr %s532, 4
        %s534 = scalar_lea.vmem %s7, %s533
        %p535 = scmp.lt.s32.totalorder %s30, 1
        %s536 = scalar_select %p535, %s30, 1
        %s537 = smul.addr %s536, 8
        %s538 = scalar_lea.vmem %s9, %s537
        %p540 = scmp.eq.s32.totalorder %s31, 0
        // Predicated region
        $region69: #{rlhf_flow_llama_math_rm_forward.2} parent=55 // pred_check
          %p541 = pneg %p540
        $region70: #{rlhf_flow_llama_math_rm_forward.2} parent=55 // pred_check_branch
          %543 = sbr.rel (%p541) target = $region72
        $region71: #{rlhf_flow_llama_math_rm_forward.2} parent=55 // pred_region
          %v544 = vld [vmem:[%s515] sm:$0xff]
          %545 = vst [vmem:[%s538] sm:$0xff] %v544
        $region72: #{rlhf_flow_llama_math_rm_forward.2} parent=55 // pred_fallthru
          _
        %v546 = vld [vmem:[%s538] sm:$0xff]
        %v547 = vld [vmem:[%s526] sm:$0x1]
        %v548 = vmul.f32 %v546, %v546
        %549 = vadd.xlane.f32.xlu0 %v548
        %v550 = vpop.xlane.xlu0 %549
        %v551 = vrcp.pop 128.0
        %v552 = vmul.f32 %v550, %v551
        %v553 = vadd.f32 %v552, 1e-06
        %v554 = vrsqrt.pop %v553
        %v555 = vmul.f32 %v546, %v554
        %v557 = vlaneseq
        %v558 = vshrl.u32 %v557, 7
        %v559 = vsub.s32 0, %v558
        %v560 = vrot.slane %v547, %v559
        %v562 = vmul.f32 %v555, %v560
        %v563 = vpack.c.bf16 %v562, %v562
        %v564 = vld [vmem:[%s427] sm:$0xff]
        %v565 = vld [vmem:[%s427 + $0x8] sm:$0xf]
        %v566 = vld [vmem:[%s427 + $0xc] sm:$0xff]
        %v567 = vld [vmem:[%s427 + $0x14] sm:$0xf]
        %v568 = vld [vmem:[%s427 + $0x18] sm:$0xff]
        %v569 = vld [vmem:[%s427 + $0x20] sm:$0xf]
        %v570 = vld [vmem:[%s427 + $0x24] sm:$0xff]
        %v571 = vld [vmem:[%s427 + $0x2c] sm:$0xf]
        %v572 = vld [vmem:[%s427 + $0x30] sm:$0xff]
        %v573 = vld [vmem:[%s427 + $0x38] sm:$0xf]
        %v574 = vld [vmem:[%s427 + $0x3c] sm:$0xff]
        %v575 = vld [vmem:[%s427 + $0x44] sm:$0xf]
        %v576 = vld [vmem:[%s427 + $0x48] sm:$0xff]
        %v577 = vld [vmem:[%s427 + $0x50] sm:$0xf]
        %v578 = vld [vmem:[%s427 + $0x54] sm:$0xff]
        %v579 = vld [vmem:[%s427 + $0x5c] sm:$0xf]
        %v580 = vld [vmem:[%s427 + $0x60] sm:$0xff]
        %v581 = vld [vmem:[%s427 + $0x68] sm:$0xf]
        %v582 = vld [vmem:[%s427 + $0x6c] sm:$0xff]
        %v583 = vld [vmem:[%s427 + $0x74] sm:$0xf]
        %v584 = vld [vmem:[%s427 + $0x78] sm:$0xff]
        %v585 = vld [vmem:[%s427 + $0x80] sm:$0xf]
        %v586 = vld [vmem:[%s427 + $0x84] sm:$0xff]
        %v587 = vld [vmem:[%s427 + $0x8c] sm:$0xf]
        %v588 = vld [vmem:[%s427 + $0x90] sm:$0xff]
        %v589 = vld [vmem:[%s427 + $0x98] sm:$0xf]
        %v590 = vld [vmem:[%s427 + $0x9c] sm:$0xff]
        %v591 = vld [vmem:[%s427 + $0xa4] sm:$0xf]
        %v592 = vld [vmem:[%s427 + $0xa8] sm:$0xff]
        %v593 = vld [vmem:[%s427 + $0xb0] sm:$0xf]
        %v594 = vld [vmem:[%s427 + $0xb4] sm:$0xff]
        %v595 = vld [vmem:[%s427 + $0xbc] sm:$0xf]
        %v628 = vunpack.c.l.b16 %v564
        %v629 = vunpack.c.h.b16 %v564
        %v630 = vunpack.c.l.b16 %v565
        %v631 = vunpack.c.l.b16 %v566
        %v632 = vunpack.c.h.b16 %v566
        %v633 = vunpack.c.l.b16 %v567
        %v634 = vunpack.c.l.b16 %v568
        %v635 = vunpack.c.h.b16 %v568
        %v636 = vunpack.c.l.b16 %v569
        %v637 = vunpack.c.l.b16 %v570
        %v638 = vunpack.c.h.b16 %v570
        %v639 = vunpack.c.l.b16 %v571
        %v640 = vunpack.c.l.b16 %v572
        %v641 = vunpack.c.h.b16 %v572
        %v642 = vunpack.c.l.b16 %v573
        %v643 = vunpack.c.l.b16 %v574
        %v644 = vunpack.c.h.b16 %v574
        %v645 = vunpack.c.l.b16 %v575
        %v646 = vunpack.c.l.b16 %v576
        %v647 = vunpack.c.h.b16 %v576
        %v648 = vunpack.c.l.b16 %v577
        %v649 = vunpack.c.l.b16 %v578
        %v650 = vunpack.c.h.b16 %v578
        %v651 = vunpack.c.l.b16 %v579
        %v652 = vunpack.c.l.b16 %v580
        %v653 = vunpack.c.h.b16 %v580
        %v654 = vunpack.c.l.b16 %v581
        %v655 = vunpack.c.l.b16 %v582
        %v656 = vunpack.c.h.b16 %v582
        %v657 = vunpack.c.l.b16 %v583
        %v658 = vunpack.c.l.b16 %v584
        %v659 = vunpack.c.h.b16 %v584
        %v660 = vunpack.c.l.b16 %v585
        %v661 = vunpack.c.l.b16 %v586
        %v662 = vunpack.c.h.b16 %v586
        %v663 = vunpack.c.l.b16 %v587
        %v664 = vunpack.c.l.b16 %v588
        %v665 = vunpack.c.h.b16 %v588
        %v666 = vunpack.c.l.b16 %v589
        %v667 = vunpack.c.l.b16 %v590
        %v668 = vunpack.c.h.b16 %v590
        %v669 = vunpack.c.l.b16 %v591
        %v670 = vunpack.c.l.b16 %v592
        %v671 = vunpack.c.h.b16 %v592
        %v672 = vunpack.c.l.b16 %v593
        %v673 = vunpack.c.l.b16 %v594
        %v674 = vunpack.c.h.b16 %v594
        %v675 = vunpack.c.l.b16 %v595
        %v676 = vpack.c.b16 %v631, %v628
        %v677 = vpack.c.b16 %v632, %v629
        %v678 = vpack.c.b16 %v633, %v630
        %v679 = vpack.c.b16 %v637, %v634
        %v680 = vpack.c.b16 %v638, %v635
        %v681 = vpack.c.b16 %v639, %v636
        %v682 = vpack.c.b16 %v643, %v640
        %v683 = vpack.c.b16 %v644, %v641
        %v684 = vpack.c.b16 %v645, %v642
        %v685 = vpack.c.b16 %v649, %v646
        %v686 = vpack.c.b16 %v650, %v647
        %v687 = vpack.c.b16 %v651, %v648
        %v688 = vpack.c.b16 %v655, %v652
        %v689 = vpack.c.b16 %v656, %v653
        %v690 = vpack.c.b16 %v657, %v654
        %v691 = vpack.c.b16 %v661, %v658
        %v692 = vpack.c.b16 %v662, %v659
        %v693 = vpack.c.b16 %v663, %v660
        %v694 = vpack.c.b16 %v667, %v664
        %v695 = vpack.c.b16 %v668, %v665
        %v696 = vpack.c.b16 %v669, %v666
        %v697 = vpack.c.b16 %v673, %v670
        %v698 = vpack.c.b16 %v674, %v671
        %v699 = vpack.c.b16 %v675, %v672
        %724 = vmatprep.subr.bf16.mxu0 %v698
        %725 = vmatpush1.bf16.msra.mxu0 %v697
        %726 = vmatprep.subr.bf16.mxu0 %v695
        %727 = vmatpush1.bf16.msra.mxu0 %v694
        %728 = vmatprep.subr.bf16.mxu0 %v692
        %729 = vmatpush1.bf16.msra.mxu0 %v691
        %730 = vmatprep.subr.bf16.mxu0 %v689
        %731 = vmatpush1.bf16.msra.mxu0 %v688
        %732 = vmatprep.subr.bf16.mxu0 %v686
        %733 = vmatpush1.bf16.msra.mxu0 %v685
        %734 = vmatprep.subr.bf16.mxu0 %v683
        %735 = vmatpush1.bf16.msra.mxu0 %v682
        %736 = vmatprep.subr.bf16.mxu0 %v680
        %737 = vmatpush1.bf16.msra.mxu0 %v679
        %738 = vmatprep.subr.bf16.mxu0 %v677
        %739 = vmatpush1.bf16.msra.mxu0 %v676
        %740 = vmatprep.subr.bf16.mxu0 0
        %741 = vmatpush2.bf16.msra.mxu0 0
        %742 = vmatprep.subr.bf16.mxu0 0
        %743 = vmatpush2.bf16.msra.mxu0 0
        %744 = vmatprep.subr.bf16.mxu0 0
        %745 = vmatpush2.bf16.msra.mxu0 0
        %746 = vmatprep.subr.bf16.mxu0 0
        %747 = vmatpush2.bf16.msra.mxu0 0
        %748 = vmatprep.subr.bf16.mxu0 0
        %749 = vmatpush2.bf16.msra.mxu0 0
        %750 = vmatprep.subr.bf16.mxu0 0
        %751 = vmatpush2.bf16.msra.mxu0 0
        %752 = vmatprep.subr.bf16.mxu0 0
        %753 = vmatpush2.bf16.msra.mxu0 0
        %754 = vmatprep.subr.bf16.mxu0 0
        %755 = vmatpush2.bf16.msra.mxu0 0
        %756 = vmatprep.mubr.bf16.mxu0 0
        %757 = vmatmul.mubr.bf16.gmra.mxu0 %v563
        %v758 = vpop.f32.mrf.mxu0
        %v759 = vadd.f32 0.0, %v758
        %v760 = vpop.f32.mrf.mxu0
        %v761 = vadd.f32 0.0, %v760
        %v762 = vpop.f32.mrf.mxu0
        %v763 = vpop.f32.mrf.mxu0
        %764 = vdwg.mxu0
        %765 = vmatprep.subr.bf16.mxu0 0
        %766 = vmatpush1.bf16.msra.mxu0 %v699
        %767 = vmatprep.subr.bf16.mxu0 0
        %768 = vmatpush1.bf16.msra.mxu0 %v696
        %769 = vmatprep.subr.bf16.mxu0 0
        %770 = vmatpush1.bf16.msra.mxu0 %v693
        %771 = vmatprep.subr.bf16.mxu0 0
        %772 = vmatpush1.bf16.msra.mxu0 %v690
        %773 = vmatprep.subr.bf16.mxu0 0
        %774 = vmatpush1.bf16.msra.mxu0 %v687
        %775 = vmatprep.subr.bf16.mxu0 0
        %776 = vmatpush1.bf16.msra.mxu0 %v684
        %777 = vmatprep.subr.bf16.mxu0 0
        %778 = vmatpush1.bf16.msra.mxu0 %v681
        %779 = vmatprep.subr.bf16.mxu0 0
        %780 = vmatpush1.bf16.msra.mxu0 %v678
        %781 = vmatprep.subr.bf16.mxu0 0
        %782 = vmatpush2.bf16.msra.mxu0 0
        %783 = vmatprep.subr.bf16.mxu0 0
        %784 = vmatpush2.bf16.msra.mxu0 0
        %785 = vmatprep.subr.bf16.mxu0 0
        %786 = vmatpush2.bf16.msra.mxu0 0
        %787 = vmatprep.subr.bf16.mxu0 0
        %788 = vmatpush2.bf16.msra.mxu0 0
        %789 = vmatprep.subr.bf16.mxu0 0
        %790 = vmatpush2.bf16.msra.mxu0 0
        %791 = vmatprep.subr.bf16.mxu0 0
        %792 = vmatpush2.bf16.msra.mxu0 0
        %793 = vmatprep.subr.bf16.mxu0 0
        %794 = vmatpush2.bf16.msra.mxu0 0
        %795 = vmatprep.subr.bf16.mxu0 0
        %796 = vmatpush2.bf16.msra.mxu0 0
        %797 = vmatprep.mubr.bf16.mxu0 0
        %798 = vmatmul.mubr.bf16.gmra.mxu0 %v563
        %v799 = vpop.f32.mrf.mxu0
        %v800 = vadd.f32 0.0, %v799
        %v801 = vpop.f32.mrf.mxu0
        %v802 = vpop.f32.mrf.mxu0
        %v803 = vpop.f32.mrf.mxu0
        %804 = vdwg.mxu0
        %v805 = vld [vmem:[%s519] sm:$0xff]
        %v806 = vld [vmem:[%s523] sm:$0xff]
        %v807 = vsub.f32 0.0, %v759
        %809 = vrot.lane.b32.xlu0 %v807, 112
        %v810 = vpop.permute.xlu0 %809
        %813 = vrot.lane.b32.xlu0 %v759, 16
        %v814 = vpop.permute.xlu0 %813
        %vm816 = vcmask 130048
        %v817 = vsel %vm816, %v810, %v814
        %vm818 = vcmask 261120
        %v819 = vsel %vm818, %v817, %v810
        %vm820 = vcmask 392192
        %v821 = vsel %vm820, %v819, %v814
        %vm822 = vcmask 523264
        %v823 = vsel %vm822, %v821, %v810
        %vm824 = vcmask 654336
        %v825 = vsel %vm824, %v823, %v814
        %vm826 = vcmask 785408
        %v827 = vsel %vm826, %v825, %v810
        %vm828 = vcmask 916480
        %v829 = vsel %vm828, %v827, %v814
        %v830 = vmul.f32 %v759, %v805
        %v831 = vmul.f32 %v829, %v806
        %v832 = vadd.f32 %v830, %v831
        %v833 = vsub.f32 0.0, %v761
        %835 = vrot.lane.b32.xlu0 %v833, 112
        %v836 = vpop.permute.xlu0 %835
        %839 = vrot.lane.b32.xlu0 %v761, 16
        %v840 = vpop.permute.xlu0 %839
        %v842 = vsel %vm816, %v836, %v840
        %v843 = vsel %vm818, %v842, %v836
        %v844 = vsel %vm820, %v843, %v840
        %v845 = vsel %vm822, %v844, %v836
        %v846 = vsel %vm824, %v845, %v840
        %v847 = vsel %vm826, %v846, %v836
        %v848 = vsel %vm828, %v847, %v840
        %v849 = vmul.f32 %v761, %v805
        %v850 = vmul.f32 %v848, %v806
        %v851 = vadd.f32 %v849, %v850
        %853 = vrot.lane.b32.xlu0 %v832, 96
        %v854 = vpop.permute.xlu0 %853
        %856 = vrot.lane.b32.xlu0 %v832, 64
        %v857 = vpop.permute.xlu0 %856
        %859 = vrot.lane.b32.xlu0 %v832, 32
        %v860 = vpop.permute.xlu0 %859
        %v862 = vpack.c.bf16 %v832, %v832
        %v863 = vpack.c.bf16 %v854, %v854
        %v864 = vpack.c.bf16 %v857, %v857
        %v865 = vpack.c.bf16 %v860, %v860
        %867 = vrot.lane.b32.xlu0 %v851, 96
        %v868 = vpop.permute.xlu0 %867
        %870 = vrot.lane.b32.xlu0 %v851, 64
        %v871 = vpop.permute.xlu0 %870
        %873 = vrot.lane.b32.xlu0 %v851, 32
        %v874 = vpop.permute.xlu0 %873
        %v876 = vpack.c.bf16 %v851, %v851
        %v877 = vpack.c.bf16 %v868, %v868
        %v878 = vpack.c.bf16 %v871, %v871
        %v879 = vpack.c.bf16 %v874, %v874
        %881 = vrot.lane.b32.xlu0 %v800, 96
        %v882 = vpop.permute.xlu0 %881
        %884 = vrot.lane.b32.xlu0 %v800, 64
        %v885 = vpop.permute.xlu0 %884
        %887 = vrot.lane.b32.xlu0 %v800, 32
        %v888 = vpop.permute.xlu0 %887
        %v890 = vpack.c.bf16 %v800, %v800
        %v891 = vpack.c.bf16 %v882, %v882
        %v892 = vpack.c.bf16 %v885, %v885
        %v893 = vpack.c.bf16 %v888, %v888
        %v894 = vlaneseq
        %v895 = vshrl.u32 %v894, 7
        %v896 = vlaneseq
        %v897 = vand.u32 %v896, 127
        %vm898 = vcmp.le.s32.totalorder %v897, %v895
        %v900 = vsel %vm818, %v862, 0
        %v903 = vsel %vm818, %v876, 0
        %905 = vmatprep.subr.bf16.mxu0 0
        %906 = vmatpush1.bf16.xpose.msra.mxu0 0
        %907 = vmatprep.subr.bf16.mxu0 0
        %908 = vmatpush1.bf16.xpose.msra.mxu0 0
        %909 = vmatprep.subr.bf16.mxu0 0
        %910 = vmatpush1.bf16.xpose.msra.mxu0 0
        %911 = vmatprep.subr.bf16.mxu0 0
        %912 = vmatpush1.bf16.xpose.msra.mxu0 0
        %913 = vmatprep.subr.bf16.mxu0 0
        %914 = vmatpush1.bf16.xpose.msra.mxu0 0
        %915 = vmatprep.subr.bf16.mxu0 0
        %916 = vmatpush1.bf16.xpose.msra.mxu0 0
        %917 = vmatprep.subr.bf16.mxu0 0
        %918 = vmatpush1.bf16.xpose.msra.mxu0 0
        %919 = vmatprep.subr.bf16.mxu0 0
        %920 = vmatpush1.bf16.xpose.msra.mxu0 %v903
        %921 = vmatprep.subr.bf16.mxu0 0
        %922 = vmatpush2.bf16.xpose.msra.mxu0 0
        %923 = vmatprep.subr.bf16.mxu0 0
        %924 = vmatpush2.bf16.xpose.msra.mxu0 0
        %925 = vmatprep.subr.bf16.mxu0 0
        %926 = vmatpush2.bf16.xpose.msra.mxu0 0
        %927 = vmatprep.subr.bf16.mxu0 0
        %928 = vmatpush2.bf16.xpose.msra.mxu0 0
        %929 = vmatprep.subr.bf16.mxu0 0
        %930 = vmatpush2.bf16.xpose.msra.mxu0 0
        %931 = vmatprep.subr.bf16.mxu0 0
        %932 = vmatpush2.bf16.xpose.msra.mxu0 0
        %933 = vmatprep.subr.bf16.mxu0 0
        %934 = vmatpush2.bf16.xpose.msra.mxu0 0
        %935 = vmatprep.subr.bf16.mxu0 0
        %936 = vmatpush2.bf16.xpose.msra.mxu0 0
        %937 = vmatprep.mubr.bf16.mxu0 0
        %938 = vmatmul.mubr.bf16.gmra.mxu0 %v900
        %v939 = vpop.f32.mrf.mxu0
        %v940 = vadd.f32 0.0, %v939
        %v941 = vpop.f32.mrf.mxu0
        %v942 = vpop.f32.mrf.mxu0
        %v943 = vpop.f32.mrf.mxu0
        %944 = vdwg.mxu0
        %v946 = vsel %vm818, %v863, 0
        %v949 = vsel %vm818, %v877, 0
        %951 = vmatprep.subr.bf16.mxu0 0
        %952 = vmatpush1.bf16.xpose.msra.mxu0 0
        %953 = vmatprep.subr.bf16.mxu0 0
        %954 = vmatpush1.bf16.xpose.msra.mxu0 0
        %955 = vmatprep.subr.bf16.mxu0 0
        %956 = vmatpush1.bf16.xpose.msra.mxu0 0
        %957 = vmatprep.subr.bf16.mxu0 0
        %958 = vmatpush1.bf16.xpose.msra.mxu0 0
        %959 = vmatprep.subr.bf16.mxu0 0
        %960 = vmatpush1.bf16.xpose.msra.mxu0 0
        %961 = vmatprep.subr.bf16.mxu0 0
        %962 = vmatpush1.bf16.xpose.msra.mxu0 0
        %963 = vmatprep.subr.bf16.mxu0 0
        %964 = vmatpush1.bf16.xpose.msra.mxu0 0
        %965 = vmatprep.subr.bf16.mxu0 0
        %966 = vmatpush1.bf16.xpose.msra.mxu0 %v949
        %967 = vmatprep.subr.bf16.mxu0 0
        %968 = vmatpush2.bf16.xpose.msra.mxu0 0
        %969 = vmatprep.subr.bf16.mxu0 0
        %970 = vmatpush2.bf16.xpose.msra.mxu0 0
        %971 = vmatprep.subr.bf16.mxu0 0
        %972 = vmatpush2.bf16.xpose.msra.mxu0 0
        %973 = vmatprep.subr.bf16.mxu0 0
        %974 = vmatpush2.bf16.xpose.msra.mxu0 0
        %975 = vmatprep.subr.bf16.mxu0 0
        %976 = vmatpush2.bf16.xpose.msra.mxu0 0
        %977 = vmatprep.subr.bf16.mxu0 0
        %978 = vmatpush2.bf16.xpose.msra.mxu0 0
        %979 = vmatprep.subr.bf16.mxu0 0
        %980 = vmatpush2.bf16.xpose.msra.mxu0 0
        %981 = vmatprep.subr.bf16.mxu0 0
        %982 = vmatpush2.bf16.xpose.msra.mxu0 0
        %983 = vmatprep.mubr.bf16.mxu0 0
        %984 = vmatmul.mubr.bf16.gmra.mxu0 %v946
        %v985 = vpop.f32.mrf.mxu0
        %v986 = vadd.f32 0.0, %v985
        %v987 = vpop.f32.mrf.mxu0
        %v988 = vpop.f32.mrf.mxu0
        %v989 = vpop.f32.mrf.mxu0
        %990 = vdwg.mxu0
        %v992 = vsel %vm818, %v864, 0
        %v995 = vsel %vm818, %v878, 0
        %997 = vmatprep.subr.bf16.mxu0 0
        %998 = vmatpush1.bf16.xpose.msra.mxu0 0
        %999 = vmatprep.subr.bf16.mxu0 0
        %1000 = vmatpush1.bf16.xpose.msra.mxu0 0
        %1001 = vmatprep.subr.bf16.mxu0 0
        %1002 = vmatpush1.bf16.xpose.msra.mxu0 0
        %1003 = vmatprep.subr.bf16.mxu0 0
        %1004 = vmatpush1.bf16.xpose.msra.mxu0 0
        %1005 = vmatprep.subr.bf16.mxu0 0
        %1006 = vmatpush1.bf16.xpose.msra.mxu0 0
        %1007 = vmatprep.subr.bf16.mxu0 0
        %1008 = vmatpush1.bf16.xpose.msra.mxu0 0
        %1009 = vmatprep.subr.bf16.mxu0 0
        %1010 = vmatpush1.bf16.xpose.msra.mxu0 0
        %1011 = vmatprep.subr.bf16.mxu0 0
        %1012 = vmatpush1.bf16.xpose.msra.mxu0 %v995
        %1013 = vmatprep.subr.bf16.mxu0 0
        %1014 = vmatpush2.bf16.xpose.msra.mxu0 0
        %1015 = vmatprep.subr.bf16.mxu0 0
        %1016 = vmatpush2.bf16.xpose.msra.mxu0 0
        %1017 = vmatprep.subr.bf16.mxu0 0
        %1018 = vmatpush2.bf16.xpose.msra.mxu0 0
        %1019 = vmatprep.subr.bf16.mxu0 0
        %1020 = vmatpush2.bf16.xpose.msra.mxu0 0
        %1021 = vmatprep.subr.bf16.mxu0 0
        %1022 = vmatpush2.bf16.xpose.msra.mxu0 0
        %1023 = vmatprep.subr.bf16.mxu0 0
        %1024 = vmatpush2.bf16.xpose.msra.mxu0 0
        %1025 = vmatprep.subr.bf16.mxu0 0
        %1026 = vmatpush2.bf16.xpose.msra.mxu0 0
        %1027 = vmatprep.subr.bf16.mxu0 0
        %1028 = vmatpush2.bf16.xpose.msra.mxu0 0
        %1029 = vmatprep.mubr.bf16.mxu0 0
        %1030 = vmatmul.mubr.bf16.gmra.mxu0 %v992
        %v1031 = vpop.f32.mrf.mxu0
        %v1032 = vadd.f32 0.0, %v1031
        %v1033 = vpop.f32.mrf.mxu0
        %v1034 = vpop.f32.mrf.mxu0
        %v1035 = vpop.f32.mrf.mxu0
        %1036 = vdwg.mxu0
        %v1038 = vsel %vm818, %v865, 0
        %v1041 = vsel %vm818, %v879, 0
        %1043 = vmatprep.subr.bf16.mxu0 0
        %1044 = vmatpush1.bf16.xpose.msra.mxu0 0
        %1045 = vmatprep.subr.bf16.mxu0 0
        %1046 = vmatpush1.bf16.xpose.msra.mxu0 0
        %1047 = vmatprep.subr.bf16.mxu0 0
        %1048 = vmatpush1.bf16.xpose.msra.mxu0 0
        %1049 = vmatprep.subr.bf16.mxu0 0
        %1050 = vmatpush1.bf16.xpose.msra.mxu0 0
        %1051 = vmatprep.subr.bf16.mxu0 0
        %1052 = vmatpush1.bf16.xpose.msra.mxu0 0
        %1053 = vmatprep.subr.bf16.mxu0 0
        %1054 = vmatpush1.bf16.xpose.msra.mxu0 0
        %1055 = vmatprep.subr.bf16.mxu0 0
        %1056 = vmatpush1.bf16.xpose.msra.mxu0 0
        %1057 = vmatprep.subr.bf16.mxu0 0
        %1058 = vmatpush1.bf16.xpose.msra.mxu0 %v1041
        %1059 = vmatprep.subr.bf16.mxu0 0
        %1060 = vmatpush2.bf16.xpose.msra.mxu0 0
        %1061 = vmatprep.subr.bf16.mxu0 0
        %1062 = vmatpush2.bf16.xpose.msra.mxu0 0
        %1063 = vmatprep.subr.bf16.mxu0 0
        %1064 = vmatpush2.bf16.xpose.msra.mxu0 0
        %1065 = vmatprep.subr.bf16.mxu0 0
        %1066 = vmatpush2.bf16.xpose.msra.mxu0 0
        %1067 = vmatprep.subr.bf16.mxu0 0
        %1068 = vmatpush2.bf16.xpose.msra.mxu0 0
        %1069 = vmatprep.subr.bf16.mxu0 0
        %1070 = vmatpush2.bf16.xpose.msra.mxu0 0
        %1071 = vmatprep.subr.bf16.mxu0 0
        %1072 = vmatpush2.bf16.xpose.msra.mxu0 0
        %1073 = vmatprep.subr.bf16.mxu0 0
        %1074 = vmatpush2.bf16.xpose.msra.mxu0 0
        %1075 = vmatprep.mubr.bf16.mxu0 0
        %1076 = vmatmul.mubr.bf16.gmra.mxu0 %v1038
        %v1077 = vpop.f32.mrf.mxu0
        %v1078 = vadd.f32 0.0, %v1077
        %v1079 = vpop.f32.mrf.mxu0
        %v1080 = vpop.f32.mrf.mxu0
        %v1081 = vpop.f32.mrf.mxu0
        %1082 = vdwg.mxu0
        %v1083 = vmul.f32 %v940, 0.17677669
        %v1084 = vmul.f32 %v986, 0.17677669
        %v1085 = vmul.f32 %v1032, 0.17677669
        %v1086 = vmul.f32 %v1078, 0.17677669
        %v1087 = vsel %vm898, 1, 0
        %vm1088 = vcmp.eq.s32.totalorder %v1087, 1
        %v1089 = vsel %vm1088, %v1083, -1e+30
        %v1090 = vsel %vm1088, %v1084, -1e+30
        %v1091 = vsel %vm1088, %v1085, -1e+30
        %v1092 = vsel %vm1088, %v1086, -1e+30
        %vm1093 = vcmask 64512
        %v1094 = vsel %vm1093, %v1089, -inf
        %1095 = vmax.xlane.f32.xlu0 %v1094
        %v1096 = vpop.xlane.xlu0 %1095
        %v1097 = vsel %vm1093, %v1090, -inf
        %1098 = vmax.xlane.f32.xlu0 %v1097
        %v1099 = vpop.xlane.xlu0 %1098
        %v1100 = vsel %vm1093, %v1091, -inf
        %1101 = vmax.xlane.f32.xlu0 %v1100
        %v1102 = vpop.xlane.xlu0 %1101
        %v1103 = vsel %vm1093, %v1092, -inf
        %1104 = vmax.xlane.f32.xlu0 %v1103
        %v1105 = vpop.xlane.xlu0 %1104
        %v1106 = vsub.f32 %v1089, %v1096
        %v1107 = vsub.f32 %v1090, %v1099
        %v1108 = vsub.f32 %v1091, %v1102
        %v1109 = vsub.f32 %v1092, %v1105
        %v1110 = vmul.f32 %v1106, 1.442695
        %v1111 = vpow.pop %v1110
        %v1112 = vmul.f32 %v1107, 1.442695
        %v1113 = vpow.pop %v1112
        %v1114 = vmul.f32 %v1108, 1.442695
        %v1115 = vpow.pop %v1114
        %v1116 = vmul.f32 %v1109, 1.442695
        %v1117 = vpow.pop %v1116
        %v1118 = vsel %vm1093, %v1111, 0.0
        %1119 = vadd.xlane.f32.xlu0 %v1118
        %v1120 = vpop.xlane.xlu0 %1119
        %v1121 = vsel %vm1093, %v1113, 0.0
        %1122 = vadd.xlane.f32.xlu0 %v1121
        %v1123 = vpop.xlane.xlu0 %1122
        %v1124 = vsel %vm1093, %v1115, 0.0
        %1125 = vadd.xlane.f32.xlu0 %v1124
        %v1126 = vpop.xlane.xlu0 %1125
        %v1127 = vsel %vm1093, %v1117, 0.0
        %1128 = vadd.xlane.f32.xlu0 %v1127
        %v1129 = vpop.xlane.xlu0 %1128
        %v1130 = vrcp.pop %v1120
        %v1131 = vmul.f32 %v1111, %v1130
        %v1132 = vrcp.pop %v1123
        %v1133 = vmul.f32 %v1113, %v1132
        %v1134 = vrcp.pop %v1126
        %v1135 = vmul.f32 %v1115, %v1134
        %v1136 = vrcp.pop %v1129
        %v1137 = vmul.f32 %v1117, %v1136
        %v1138 = vpack.c.bf16 %v1131, %v1131
        %v1139 = vpack.c.bf16 %v1133, %v1133
        %v1140 = vpack.c.bf16 %v1135, %v1135
        %v1141 = vpack.c.bf16 %v1137, %v1137
        %v1143 = vsel %vm1093, %v1138, 0
        %vm1145 = vcmask 1043456
        %v1147 = vsel %vm1145, %v890, 0
        %1149 = vmatprep.subr.bf16.mxu0 0
        %1150 = vmatpush1.bf16.msra.mxu0 0
        %1151 = vmatprep.subr.bf16.mxu0 0
        %1152 = vmatpush1.bf16.msra.mxu0 0
        %1153 = vmatprep.subr.bf16.mxu0 0
        %1154 = vmatpush1.bf16.msra.mxu0 0
        %1155 = vmatprep.subr.bf16.mxu0 0
        %1156 = vmatpush1.bf16.msra.mxu0 0
        %1157 = vmatprep.subr.bf16.mxu0 0
        %1158 = vmatpush1.bf16.msra.mxu0 0
        %1159 = vmatprep.subr.bf16.mxu0 0
        %1160 = vmatpush1.bf16.msra.mxu0 0
        %1161 = vmatprep.subr.bf16.mxu0 0
        %1162 = vmatpush1.bf16.msra.mxu0 0
        %1163 = vmatprep.subr.bf16.mxu0 0
        %1164 = vmatpush1.bf16.msra.mxu0 %v1147
        %1165 = vmatprep.subr.bf16.mxu0 0
        %1166 = vmatpush2.bf16.msra.mxu0 0
        %1167 = vmatprep.subr.bf16.mxu0 0
        %1168 = vmatpush2.bf16.msra.mxu0 0
        %1169 = vmatprep.subr.bf16.mxu0 0
        %1170 = vmatpush2.bf16.msra.mxu0 0
        %1171 = vmatprep.subr.bf16.mxu0 0
        %1172 = vmatpush2.bf16.msra.mxu0 0
        %1173 = vmatprep.subr.bf16.mxu0 0
        %1174 = vmatpush2.bf16.msra.mxu0 0
        %1175 = vmatprep.subr.bf16.mxu0 0
        %1176 = vmatpush2.bf16.msra.mxu0 0
        %1177 = vmatprep.subr.bf16.mxu0 0
        %1178 = vmatpush2.bf16.msra.mxu0 0
        %1179 = vmatprep.subr.bf16.mxu0 0
        %1180 = vmatpush2.bf16.msra.mxu0 0
        %1181 = vmatprep.mubr.bf16.mxu0 0
        %1182 = vmatmul.mubr.bf16.gmra.mxu0 %v1143
        %v1183 = vpop.f32.mrf.mxu0
        %v1184 = vadd.f32 0.0, %v1183
        %v1185 = vpop.f32.mrf.mxu0
        %v1186 = vpop.f32.mrf.mxu0
        %v1187 = vpop.f32.mrf.mxu0
        %1188 = vdwg.mxu0
        %v1190 = vsel %vm1093, %v1139, 0
        %v1193 = vsel %vm1145, %v891, 0
        %1195 = vmatprep.subr.bf16.mxu0 0
        %1196 = vmatpush1.bf16.msra.mxu0 0
        %1197 = vmatprep.subr.bf16.mxu0 0
        %1198 = vmatpush1.bf16.msra.mxu0 0
        %1199 = vmatprep.subr.bf16.mxu0 0
        %1200 = vmatpush1.bf16.msra.mxu0 0
        %1201 = vmatprep.subr.bf16.mxu0 0
        %1202 = vmatpush1.bf16.msra.mxu0 0
        %1203 = vmatprep.subr.bf16.mxu0 0
        %1204 = vmatpush1.bf16.msra.mxu0 0
        %1205 = vmatprep.subr.bf16.mxu0 0
        %1206 = vmatpush1.bf16.msra.mxu0 0
        %1207 = vmatprep.subr.bf16.mxu0 0
        %1208 = vmatpush1.bf16.msra.mxu0 0
        %1209 = vmatprep.subr.bf16.mxu0 0
        %1210 = vmatpush1.bf16.msra.mxu0 %v1193
        %1211 = vmatprep.subr.bf16.mxu0 0
        %1212 = vmatpush2.bf16.msra.mxu0 0
        %1213 = vmatprep.subr.bf16.mxu0 0
        %1214 = vmatpush2.bf16.msra.mxu0 0
        %1215 = vmatprep.subr.bf16.mxu0 0
        %1216 = vmatpush2.bf16.msra.mxu0 0
        %1217 = vmatprep.subr.bf16.mxu0 0
        %1218 = vmatpush2.bf16.msra.mxu0 0
        %1219 = vmatprep.subr.bf16.mxu0 0
        %1220 = vmatpush2.bf16.msra.mxu0 0
        %1221 = vmatprep.subr.bf16.mxu0 0
        %1222 = vmatpush2.bf16.msra.mxu0 0
        %1223 = vmatprep.subr.bf16.mxu0 0
        %1224 = vmatpush2.bf16.msra.mxu0 0
        %1225 = vmatprep.subr.bf16.mxu0 0
        %1226 = vmatpush2.bf16.msra.mxu0 0
        %1227 = vmatprep.mubr.bf16.mxu0 0
        %1228 = vmatmul.mubr.bf16.gmra.mxu0 %v1190
        %v1229 = vpop.f32.mrf.mxu0
        %v1230 = vadd.f32 0.0, %v1229
        %v1231 = vpop.f32.mrf.mxu0
        %v1232 = vpop.f32.mrf.mxu0
        %v1233 = vpop.f32.mrf.mxu0
        %1234 = vdwg.mxu0
        %v1236 = vsel %vm1093, %v1140, 0
        %v1239 = vsel %vm1145, %v892, 0
        %1241 = vmatprep.subr.bf16.mxu0 0
        %1242 = vmatpush1.bf16.msra.mxu0 0
        %1243 = vmatprep.subr.bf16.mxu0 0
        %1244 = vmatpush1.bf16.msra.mxu0 0
        %1245 = vmatprep.subr.bf16.mxu0 0
        %1246 = vmatpush1.bf16.msra.mxu0 0
        %1247 = vmatprep.subr.bf16.mxu0 0
        %1248 = vmatpush1.bf16.msra.mxu0 0
        %1249 = vmatprep.subr.bf16.mxu0 0
        %1250 = vmatpush1.bf16.msra.mxu0 0
        %1251 = vmatprep.subr.bf16.mxu0 0
        %1252 = vmatpush1.bf16.msra.mxu0 0
        %1253 = vmatprep.subr.bf16.mxu0 0
        %1254 = vmatpush1.bf16.msra.mxu0 0
        %1255 = vmatprep.subr.bf16.mxu0 0
        %1256 = vmatpush1.bf16.msra.mxu0 %v1239
        %1257 = vmatprep.subr.bf16.mxu0 0
        %1258 = vmatpush2.bf16.msra.mxu0 0
        %1259 = vmatprep.subr.bf16.mxu0 0
        %1260 = vmatpush2.bf16.msra.mxu0 0
        %1261 = vmatprep.subr.bf16.mxu0 0
        %1262 = vmatpush2.bf16.msra.mxu0 0
        %1263 = vmatprep.subr.bf16.mxu0 0
        %1264 = vmatpush2.bf16.msra.mxu0 0
        %1265 = vmatprep.subr.bf16.mxu0 0
        %1266 = vmatpush2.bf16.msra.mxu0 0
        %1267 = vmatprep.subr.bf16.mxu0 0
        %1268 = vmatpush2.bf16.msra.mxu0 0
        %1269 = vmatprep.subr.bf16.mxu0 0
        %1270 = vmatpush2.bf16.msra.mxu0 0
        %1271 = vmatprep.subr.bf16.mxu0 0
        %1272 = vmatpush2.bf16.msra.mxu0 0
        %1273 = vmatprep.mubr.bf16.mxu0 0
        %1274 = vmatmul.mubr.bf16.gmra.mxu0 %v1236
        %v1275 = vpop.f32.mrf.mxu0
        %v1276 = vadd.f32 0.0, %v1275
        %v1277 = vpop.f32.mrf.mxu0
        %v1278 = vpop.f32.mrf.mxu0
        %v1279 = vpop.f32.mrf.mxu0
        %1280 = vdwg.mxu0
        %v1282 = vsel %vm1093, %v1141, 0
        %v1285 = vsel %vm1145, %v893, 0
        %1287 = vmatprep.subr.bf16.mxu0 0
        %1288 = vmatpush1.bf16.msra.mxu0 0
        %1289 = vmatprep.subr.bf16.mxu0 0
        %1290 = vmatpush1.bf16.msra.mxu0 0
        %1291 = vmatprep.subr.bf16.mxu0 0
        %1292 = vmatpush1.bf16.msra.mxu0 0
        %1293 = vmatprep.subr.bf16.mxu0 0
        %1294 = vmatpush1.bf16.msra.mxu0 0
        %1295 = vmatprep.subr.bf16.mxu0 0
        %1296 = vmatpush1.bf16.msra.mxu0 0
        %1297 = vmatprep.subr.bf16.mxu0 0
        %1298 = vmatpush1.bf16.msra.mxu0 0
        %1299 = vmatprep.subr.bf16.mxu0 0
        %1300 = vmatpush1.bf16.msra.mxu0 0
        %1301 = vmatprep.subr.bf16.mxu0 0
        %1302 = vmatpush1.bf16.msra.mxu0 %v1285
        %1303 = vmatprep.subr.bf16.mxu0 0
        %1304 = vmatpush2.bf16.msra.mxu0 0
        %1305 = vmatprep.subr.bf16.mxu0 0
        %1306 = vmatpush2.bf16.msra.mxu0 0
        %1307 = vmatprep.subr.bf16.mxu0 0
        %1308 = vmatpush2.bf16.msra.mxu0 0
        %1309 = vmatprep.subr.bf16.mxu0 0
        %1310 = vmatpush2.bf16.msra.mxu0 0
        %1311 = vmatprep.subr.bf16.mxu0 0
        %1312 = vmatpush2.bf16.msra.mxu0 0
        %1313 = vmatprep.subr.bf16.mxu0 0
        %1314 = vmatpush2.bf16.msra.mxu0 0
        %1315 = vmatprep.subr.bf16.mxu0 0
        %1316 = vmatpush2.bf16.msra.mxu0 0
        %1317 = vmatprep.subr.bf16.mxu0 0
        %1318 = vmatpush2.bf16.msra.mxu0 0
        %1319 = vmatprep.mubr.bf16.mxu0 0
        %1320 = vmatmul.mubr.bf16.gmra.mxu0 %v1282
        %v1321 = vpop.f32.mrf.mxu0
        %v1322 = vadd.f32 0.0, %v1321
        %v1323 = vpop.f32.mrf.mxu0
        %v1324 = vpop.f32.mrf.mxu0
        %v1325 = vpop.f32.mrf.mxu0
        %1326 = vdwg.mxu0
        %1328 = vrot.lane.b32.xlu0 %v1230, 32
        %v1329 = vpop.permute.xlu0 %1328
        %1332 = vrot.lane.b32.xlu0 %v1276, 64
        %v1333 = vpop.permute.xlu0 %1332
        %1336 = vrot.lane.b32.xlu0 %v1322, 96
        %v1337 = vpop.permute.xlu0 %1336
        %v1339 = vsel %vm818, %v1184, %v1329
        %v1340 = vsel %vm822, %v1339, %v1333
        %v1341 = vsel %vm826, %v1340, %v1337
        %v1342 = vpack.c.bf16 %v1341, %v1341
        %v1343 = vld [vmem:[%s436] sm:$0xf]
        %v1344 = vld [vmem:[%s436 + $0x4] sm:$0xf]
        %v1345 = vld [vmem:[%s436 + $0x8] sm:$0xf]
        %v1346 = vld [vmem:[%s436 + $0xc] sm:$0xf]
        %v1347 = vld [vmem:[%s436 + $0x10] sm:$0xf]
        %v1348 = vld [vmem:[%s436 + $0x14] sm:$0xf]
        %v1349 = vld [vmem:[%s436 + $0x18] sm:$0xf]
        %v1350 = vld [vmem:[%s436 + $0x1c] sm:$0xf]
        %v1351 = vld [vmem:[%s436 + $0x20] sm:$0xf]
        %v1352 = vld [vmem:[%s436 + $0x24] sm:$0xf]
        %v1353 = vld [vmem:[%s436 + $0x28] sm:$0xf]
        %v1354 = vld [vmem:[%s436 + $0x2c] sm:$0xf]
        %v1355 = vld [vmem:[%s436 + $0x30] sm:$0xf]
        %v1356 = vld [vmem:[%s436 + $0x34] sm:$0xf]
        %v1357 = vld [vmem:[%s436 + $0x38] sm:$0xf]
        %v1358 = vld [vmem:[%s436 + $0x3c] sm:$0xf]
        %v1375 = vunpack.c.l.b16 %v1343
        %v1376 = vunpack.c.l.b16 %v1344
        %v1377 = vunpack.c.l.b16 %v1345
        %v1378 = vunpack.c.l.b16 %v1346
        %v1379 = vunpack.c.l.b16 %v1347
        %v1380 = vunpack.c.l.b16 %v1348
        %v1381 = vunpack.c.l.b16 %v1349
        %v1382 = vunpack.c.l.b16 %v1350
        %v1383 = vunpack.c.l.b16 %v1351
        %v1384 = vunpack.c.l.b16 %v1352
        %v1385 = vunpack.c.l.b16 %v1353
        %v1386 = vunpack.c.l.b16 %v1354
        %v1387 = vunpack.c.l.b16 %v1355
        %v1388 = vunpack.c.l.b16 %v1356
        %v1389 = vunpack.c.l.b16 %v1357
        %v1390 = vunpack.c.l.b16 %v1358
        %v1391 = vpack.c.b16 %v1376, %v1375
        %v1392 = vpack.c.b16 %v1378, %v1377
        %v1393 = vpack.c.b16 %v1380, %v1379
        %v1394 = vpack.c.b16 %v1382, %v1381
        %v1395 = vpack.c.b16 %v1384, %v1383
        %v1396 = vpack.c.b16 %v1386, %v1385
        %v1397 = vpack.c.b16 %v1388, %v1387
        %v1398 = vpack.c.b16 %v1390, %v1389
        %1407 = vmatprep.subr.bf16.mxu0 0
        %1408 = vmatpush1.bf16.msra.mxu0 %v1398
        %1409 = vmatprep.subr.bf16.mxu0 0
        %1410 = vmatpush1.bf16.msra.mxu0 %v1397
        %1411 = vmatprep.subr.bf16.mxu0 0
        %1412 = vmatpush1.bf16.msra.mxu0 %v1396
        %1413 = vmatprep.subr.bf16.mxu0 0
        %1414 = vmatpush1.bf16.msra.mxu0 %v1395
        %1415 = vmatprep.subr.bf16.mxu0 0
        %1416 = vmatpush1.bf16.msra.mxu0 %v1394
        %1417 = vmatprep.subr.bf16.mxu0 0
        %1418 = vmatpush1.bf16.msra.mxu0 %v1393
        %1419 = vmatprep.subr.bf16.mxu0 0
        %1420 = vmatpush1.bf16.msra.mxu0 %v1392
        %1421 = vmatprep.subr.bf16.mxu0 0
        %1422 = vmatpush1.bf16.msra.mxu0 %v1391
        %1423 = vmatprep.subr.bf16.mxu0 0
        %1424 = vmatpush2.bf16.msra.mxu0 0
        %1425 = vmatprep.subr.bf16.mxu0 0
        %1426 = vmatpush2.bf16.msra.mxu0 0
        %1427 = vmatprep.subr.bf16.mxu0 0
        %1428 = vmatpush2.bf16.msra.mxu0 0
        %1429 = vmatprep.subr.bf16.mxu0 0
        %1430 = vmatpush2.bf16.msra.mxu0 0
        %1431 = vmatprep.subr.bf16.mxu0 0
        %1432 = vmatpush2.bf16.msra.mxu0 0
        %1433 = vmatprep.subr.bf16.mxu0 0
        %1434 = vmatpush2.bf16.msra.mxu0 0
        %1435 = vmatprep.subr.bf16.mxu0 0
        %1436 = vmatpush2.bf16.msra.mxu0 0
        %1437 = vmatprep.subr.bf16.mxu0 0
        %1438 = vmatpush2.bf16.msra.mxu0 0
        %1439 = vmatprep.mubr.bf16.mxu0 0
        %1440 = vmatmul.mubr.bf16.gmra.mxu0 %v1342
        %v1441 = vpop.f32.mrf.mxu0
        %v1442 = vadd.f32 0.0, %v1441
        %v1443 = vpop.f32.mrf.mxu0
        %v1444 = vpop.f32.mrf.mxu0
        %v1445 = vpop.f32.mrf.mxu0
        %1446 = vdwg.mxu0
        %v1447 = vadd.f32 %v546, %v1442
        %v1448 = vld [vmem:[%s529] sm:$0x1]
        %v1449 = vmul.f32 %v1447, %v1447
        %1450 = vadd.xlane.f32.xlu0 %v1449
        %v1451 = vpop.xlane.xlu0 %1450
        %v1452 = vmul.f32 %v1451, %v551
        %v1453 = vadd.f32 %v1452, 1e-06
        %v1454 = vrsqrt.pop %v1453
        %v1455 = vmul.f32 %v1447, %v1454
        %v1457 = vlaneseq
        %v1458 = vshrl.u32 %v1457, 7
        %v1459 = vsub.s32 0, %v1458
        %v1460 = vrot.slane %v1448, %v1459
        %v1462 = vmul.f32 %v1455, %v1460
        %v1463 = vpack.c.bf16 %v1462, %v1462
        %v1464 = vld [vmem:[%s534] sm:$0xff]
        %v1465 = vld [vmem:[%s534 + $0x8] sm:$0xff]
        %v1466 = vld [vmem:[%s534 + $0x10] sm:$0xff]
        %v1467 = vld [vmem:[%s534 + $0x18] sm:$0xff]
        %v1468 = vld [vmem:[%s534 + $0x20] sm:$0xff]
        %v1469 = vld [vmem:[%s534 + $0x28] sm:$0xff]
        %v1470 = vld [vmem:[%s534 + $0x30] sm:$0xff]
        %v1471 = vld [vmem:[%s534 + $0x38] sm:$0xff]
        %v1472 = vld [vmem:[%s534 + $0x40] sm:$0xff]
        %v1473 = vld [vmem:[%s534 + $0x48] sm:$0xff]
        %v1474 = vld [vmem:[%s534 + $0x50] sm:$0xff]
        %v1475 = vld [vmem:[%s534 + $0x58] sm:$0xff]
        %v1476 = vld [vmem:[%s534 + $0x60] sm:$0xff]
        %v1477 = vld [vmem:[%s534 + $0x68] sm:$0xff]
        %v1478 = vld [vmem:[%s534 + $0x70] sm:$0xff]
        %v1479 = vld [vmem:[%s534 + $0x78] sm:$0xff]
        %v1480 = vld [vmem:[%s534 + $0x80] sm:$0xff]
        %v1481 = vld [vmem:[%s534 + $0x88] sm:$0xff]
        %v1482 = vld [vmem:[%s534 + $0x90] sm:$0xff]
        %v1483 = vld [vmem:[%s534 + $0x98] sm:$0xff]
        %v1484 = vld [vmem:[%s534 + $0xa0] sm:$0xff]
        %v1485 = vld [vmem:[%s534 + $0xa8] sm:$0xff]
        %v1486 = vld [vmem:[%s534 + $0xb0] sm:$0xff]
        %v1487 = vld [vmem:[%s534 + $0xb8] sm:$0xff]
        %v1488 = vld [vmem:[%s534 + $0xc0] sm:$0xff]
        %v1489 = vld [vmem:[%s534 + $0xc8] sm:$0xff]
        %v1490 = vld [vmem:[%s534 + $0xd0] sm:$0xff]
        %v1491 = vld [vmem:[%s534 + $0xd8] sm:$0xff]
        %v1492 = vld [vmem:[%s534 + $0xe0] sm:$0xff]
        %v1493 = vld [vmem:[%s534 + $0xe8] sm:$0xff]
        %v1494 = vld [vmem:[%s534 + $0xf0] sm:$0xff]
        %v1495 = vld [vmem:[%s534 + $0xf8] sm:$0xff]
        %v1528 = vunpack.c.l.b16 %v1464
        %v1529 = vunpack.c.h.b16 %v1464
        %v1530 = vunpack.c.l.b16 %v1465
        %v1531 = vunpack.c.h.b16 %v1465
        %v1532 = vunpack.c.l.b16 %v1466
        %v1533 = vunpack.c.h.b16 %v1466
        %v1534 = vunpack.c.l.b16 %v1467
        %v1535 = vunpack.c.h.b16 %v1467
        %v1536 = vunpack.c.l.b16 %v1468
        %v1537 = vunpack.c.h.b16 %v1468
        %v1538 = vunpack.c.l.b16 %v1469
        %v1539 = vunpack.c.h.b16 %v1469
        %v1540 = vunpack.c.l.b16 %v1470
        %v1541 = vunpack.c.h.b16 %v1470
        %v1542 = vunpack.c.l.b16 %v1471
        %v1543 = vunpack.c.h.b16 %v1471
        %v1544 = vunpack.c.l.b16 %v1472
        %v1545 = vunpack.c.h.b16 %v1472
        %v1546 = vunpack.c.l.b16 %v1473
        %v1547 = vunpack.c.h.b16 %v1473
        %v1548 = vunpack.c.l.b16 %v1474
        %v1549 = vunpack.c.h.b16 %v1474
        %v1550 = vunpack.c.l.b16 %v1475
        %v1551 = vunpack.c.h.b16 %v1475
        %v1552 = vunpack.c.l.b16 %v1476
        %v1553 = vunpack.c.h.b16 %v1476
        %v1554 = vunpack.c.l.b16 %v1477
        %v1555 = vunpack.c.h.b16 %v1477
        %v1556 = vunpack.c.l.b16 %v1478
        %v1557 = vunpack.c.h.b16 %v1478
        %v1558 = vunpack.c.l.b16 %v1479
        %v1559 = vunpack.c.h.b16 %v1479
        %v1560 = vunpack.c.l.b16 %v1480
        %v1561 = vunpack.c.h.b16 %v1480
        %v1562 = vunpack.c.l.b16 %v1481
        %v1563 = vunpack.c.h.b16 %v1481
        %v1564 = vunpack.c.l.b16 %v1482
        %v1565 = vunpack.c.h.b16 %v1482
        %v1566 = vunpack.c.l.b16 %v1483
        %v1567 = vunpack.c.h.b16 %v1483
        %v1568 = vunpack.c.l.b16 %v1484
        %v1569 = vunpack.c.h.b16 %v1484
        %v1570 = vunpack.c.l.b16 %v1485
        %v1571 = vunpack.c.h.b16 %v1485
        %v1572 = vunpack.c.l.b16 %v1486
        %v1573 = vunpack.c.h.b16 %v1486
        %v1574 = vunpack.c.l.b16 %v1487
        %v1575 = vunpack.c.h.b16 %v1487
        %v1576 = vunpack.c.l.b16 %v1488
        %v1577 = vunpack.c.h.b16 %v1488
        %v1578 = vunpack.c.l.b16 %v1489
        %v1579 = vunpack.c.h.b16 %v1489
        %v1580 = vunpack.c.l.b16 %v1490
        %v1581 = vunpack.c.h.b16 %v1490
        %v1582 = vunpack.c.l.b16 %v1491
        %v1583 = vunpack.c.h.b16 %v1491
        %v1584 = vunpack.c.l.b16 %v1492
        %v1585 = vunpack.c.h.b16 %v1492
        %v1586 = vunpack.c.l.b16 %v1493
        %v1587 = vunpack.c.h.b16 %v1493
        %v1588 = vunpack.c.l.b16 %v1494
        %v1589 = vunpack.c.h.b16 %v1494
        %v1590 = vunpack.c.l.b16 %v1495
        %v1591 = vunpack.c.h.b16 %v1495
        %v1592 = vpack.c.b16 %v1532, %v1528
        %v1593 = vpack.c.b16 %v1533, %v1529
        %v1594 = vpack.c.b16 %v1534, %v1530
        %v1595 = vpack.c.b16 %v1535, %v1531
        %v1596 = vpack.c.b16 %v1540, %v1536
        %v1597 = vpack.c.b16 %v1541, %v1537
        %v1598 = vpack.c.b16 %v1542, %v1538
        %v1599 = vpack.c.b16 %v1543, %v1539
        %v1600 = vpack.c.b16 %v1548, %v1544
        %v1601 = vpack.c.b16 %v1549, %v1545
        %v1602 = vpack.c.b16 %v1550, %v1546
        %v1603 = vpack.c.b16 %v1551, %v1547
        %v1604 = vpack.c.b16 %v1556, %v1552
        %v1605 = vpack.c.b16 %v1557, %v1553
        %v1606 = vpack.c.b16 %v1558, %v1554
        %v1607 = vpack.c.b16 %v1559, %v1555
        %v1608 = vpack.c.b16 %v1564, %v1560
        %v1609 = vpack.c.b16 %v1565, %v1561
        %v1610 = vpack.c.b16 %v1566, %v1562
        %v1611 = vpack.c.b16 %v1567, %v1563
        %v1612 = vpack.c.b16 %v1572, %v1568
        %v1613 = vpack.c.b16 %v1573, %v1569
        %v1614 = vpack.c.b16 %v1574, %v1570
        %v1615 = vpack.c.b16 %v1575, %v1571
        %v1616 = vpack.c.b16 %v1580, %v1576
        %v1617 = vpack.c.b16 %v1581, %v1577
        %v1618 = vpack.c.b16 %v1582, %v1578
        %v1619 = vpack.c.b16 %v1583, %v1579
        %v1620 = vpack.c.b16 %v1588, %v1584
        %v1621 = vpack.c.b16 %v1589, %v1585
        %v1622 = vpack.c.b16 %v1590, %v1586
        %v1623 = vpack.c.b16 %v1591, %v1587
        %1656 = vmatprep.subr.bf16.mxu0 %v1621
        %1657 = vmatpush1.bf16.msra.mxu0 %v1620
        %1658 = vmatprep.subr.bf16.mxu0 %v1617
        %1659 = vmatpush1.bf16.msra.mxu0 %v1616
        %1660 = vmatprep.subr.bf16.mxu0 %v1613
        %1661 = vmatpush1.bf16.msra.mxu0 %v1612
        %1662 = vmatprep.subr.bf16.mxu0 %v1609
        %1663 = vmatpush1.bf16.msra.mxu0 %v1608
        %1664 = vmatprep.subr.bf16.mxu0 %v1605
        %1665 = vmatpush1.bf16.msra.mxu0 %v1604
        %1666 = vmatprep.subr.bf16.mxu0 %v1601
        %1667 = vmatpush1.bf16.msra.mxu0 %v1600
        %1668 = vmatprep.subr.bf16.mxu0 %v1597
        %1669 = vmatpush1.bf16.msra.mxu0 %v1596
        %1670 = vmatprep.subr.bf16.mxu0 %v1593
        %1671 = vmatpush1.bf16.msra.mxu0 %v1592
        %1672 = vmatprep.subr.bf16.mxu0 0
        %1673 = vmatpush2.bf16.msra.mxu0 0
        %1674 = vmatprep.subr.bf16.mxu0 0
        %1675 = vmatpush2.bf16.msra.mxu0 0
        %1676 = vmatprep.subr.bf16.mxu0 0
        %1677 = vmatpush2.bf16.msra.mxu0 0
        %1678 = vmatprep.subr.bf16.mxu0 0
        %1679 = vmatpush2.bf16.msra.mxu0 0
        %1680 = vmatprep.subr.bf16.mxu0 0
        %1681 = vmatpush2.bf16.msra.mxu0 0
        %1682 = vmatprep.subr.bf16.mxu0 0
        %1683 = vmatpush2.bf16.msra.mxu0 0
        %1684 = vmatprep.subr.bf16.mxu0 0
        %1685 = vmatpush2.bf16.msra.mxu0 0
        %1686 = vmatprep.subr.bf16.mxu0 0
        %1687 = vmatpush2.bf16.msra.mxu0 0
        %1688 = vmatprep.mubr.bf16.mxu0 0
        %1689 = vmatmul.mubr.bf16.gmra.mxu0 %v1463
        %v1690 = vpop.f32.mrf.mxu0
        %v1691 = vadd.f32 0.0, %v1690
        %v1692 = vpop.f32.mrf.mxu0
        %v1693 = vadd.f32 0.0, %v1692
        %v1694 = vpop.f32.mrf.mxu0
        %v1695 = vpop.f32.mrf.mxu0
        %1696 = vdwg.mxu0
        %1697 = vmatprep.subr.bf16.mxu0 %v1623
        %1698 = vmatpush1.bf16.msra.mxu0 %v1622
        %1699 = vmatprep.subr.bf16.mxu0 %v1619
        %1700 = vmatpush1.bf16.msra.mxu0 %v1618
        %1701 = vmatprep.subr.bf16.mxu0 %v1615
        %1702 = vmatpush1.bf16.msra.mxu0 %v1614
        %1703 = vmatprep.subr.bf16.mxu0 %v1611
        %1704 = vmatpush1.bf16.msra.mxu0 %v1610
        %1705 = vmatprep.subr.bf16.mxu0 %v1607
        %1706 = vmatpush1.bf16.msra.mxu0 %v1606
        %1707 = vmatprep.subr.bf16.mxu0 %v1603
        %1708 = vmatpush1.bf16.msra.mxu0 %v1602
        %1709 = vmatprep.subr.bf16.mxu0 %v1599
        %1710 = vmatpush1.bf16.msra.mxu0 %v1598
        %1711 = vmatprep.subr.bf16.mxu0 %v1595
        %1712 = vmatpush1.bf16.msra.mxu0 %v1594
        %1713 = vmatprep.subr.bf16.mxu0 0
        %1714 = vmatpush2.bf16.msra.mxu0 0
        %1715 = vmatprep.subr.bf16.mxu0 0
        %1716 = vmatpush2.bf16.msra.mxu0 0
        %1717 = vmatprep.subr.bf16.mxu0 0
        %1718 = vmatpush2.bf16.msra.mxu0 0
        %1719 = vmatprep.subr.bf16.mxu0 0
        %1720 = vmatpush2.bf16.msra.mxu0 0
        %1721 = vmatprep.subr.bf16.mxu0 0
        %1722 = vmatpush2.bf16.msra.mxu0 0
        %1723 = vmatprep.subr.bf16.mxu0 0
        %1724 = vmatpush2.bf16.msra.mxu0 0
        %1725 = vmatprep.subr.bf16.mxu0 0
        %1726 = vmatpush2.bf16.msra.mxu0 0
        %1727 = vmatprep.subr.bf16.mxu0 0
        %1728 = vmatpush2.bf16.msra.mxu0 0
        %1729 = vmatprep.mubr.bf16.mxu0 0
        %1730 = vmatmul.mubr.bf16.gmra.mxu0 %v1463
        %v1731 = vpop.f32.mrf.mxu0
        %v1732 = vadd.f32 0.0, %v1731
        %v1733 = vpop.f32.mrf.mxu0
        %v1734 = vadd.f32 0.0, %v1733
        %v1735 = vpop.f32.mrf.mxu0
        %v1736 = vpop.f32.mrf.mxu0
        %1737 = vdwg.mxu0
        %v1738 = vmul.f32 %v1691, 0.5
        %v1739 = vmul.f32 %v1693, 0.5
        %v1740 = vtanh.pop %v1738
        %v1741 = vtanh.pop %v1739
        %v1742 = vadd.f32 %v1740, 1.0
        %v1743 = vadd.f32 %v1741, 1.0
        %v1744 = vmul.f32 %v1742, 0.5
        %v1745 = vmul.f32 %v1743, 0.5
        %v1746 = vmul.f32 %v1691, %v1744
        %v1747 = vmul.f32 %v1693, %v1745
        %v1748 = vmul.f32 %v1746, %v1732
        %v1749 = vmul.f32 %v1747, %v1734
        %v1750 = vpack.c.bf16 %v1748, %v1748
        %v1751 = vpack.c.bf16 %v1749, %v1749
        %v1752 = vld [vmem:[%s445] sm:$0xf]
        %v1753 = vld [vmem:[%s445 + $0x4] sm:$0xf]
        %v1754 = vld [vmem:[%s445 + $0x8] sm:$0xf]
        %v1755 = vld [vmem:[%s445 + $0xc] sm:$0xf]
        %v1756 = vld [vmem:[%s445 + $0x10] sm:$0xf]
        %v1757 = vld [vmem:[%s445 + $0x14] sm:$0xf]
        %v1758 = vld [vmem:[%s445 + $0x18] sm:$0xf]
        %v1759 = vld [vmem:[%s445 + $0x1c] sm:$0xf]
        %v1760 = vld [vmem:[%s445 + $0x20] sm:$0xf]
        %v1761 = vld [vmem:[%s445 + $0x24] sm:$0xf]
        %v1762 = vld [vmem:[%s445 + $0x28] sm:$0xf]
        %v1763 = vld [vmem:[%s445 + $0x2c] sm:$0xf]
        %v1764 = vld [vmem:[%s445 + $0x30] sm:$0xf]
        %v1765 = vld [vmem:[%s445 + $0x34] sm:$0xf]
        %v1766 = vld [vmem:[%s445 + $0x38] sm:$0xf]
        %v1767 = vld [vmem:[%s445 + $0x3c] sm:$0xf]
        %v1768 = vld [vmem:[%s445 + $0x40] sm:$0xf]
        %v1769 = vld [vmem:[%s445 + $0x44] sm:$0xf]
        %v1770 = vld [vmem:[%s445 + $0x48] sm:$0xf]
        %v1771 = vld [vmem:[%s445 + $0x4c] sm:$0xf]
        %v1772 = vld [vmem:[%s445 + $0x50] sm:$0xf]
        %v1773 = vld [vmem:[%s445 + $0x54] sm:$0xf]
        %v1774 = vld [vmem:[%s445 + $0x58] sm:$0xf]
        %v1775 = vld [vmem:[%s445 + $0x5c] sm:$0xf]
        %v1776 = vld [vmem:[%s445 + $0x60] sm:$0xf]
        %v1777 = vld [vmem:[%s445 + $0x64] sm:$0xf]
        %v1778 = vld [vmem:[%s445 + $0x68] sm:$0xf]
        %v1779 = vld [vmem:[%s445 + $0x6c] sm:$0xf]
        %v1780 = vld [vmem:[%s445 + $0x70] sm:$0xf]
        %v1781 = vld [vmem:[%s445 + $0x74] sm:$0xf]
        %v1782 = vld [vmem:[%s445 + $0x78] sm:$0xf]
        %v1783 = vld [vmem:[%s445 + $0x7c] sm:$0xf]
        %v1816 = vunpack.c.l.b16 %v1752
        %v1817 = vunpack.c.l.b16 %v1753
        %v1818 = vunpack.c.l.b16 %v1754
        %v1819 = vunpack.c.l.b16 %v1755
        %v1820 = vunpack.c.l.b16 %v1756
        %v1821 = vunpack.c.l.b16 %v1757
        %v1822 = vunpack.c.l.b16 %v1758
        %v1823 = vunpack.c.l.b16 %v1759
        %v1824 = vunpack.c.l.b16 %v1760
        %v1825 = vunpack.c.l.b16 %v1761
        %v1826 = vunpack.c.l.b16 %v1762
        %v1827 = vunpack.c.l.b16 %v1763
        %v1828 = vunpack.c.l.b16 %v1764
        %v1829 = vunpack.c.l.b16 %v1765
        %v1830 = vunpack.c.l.b16 %v1766
        %v1831 = vunpack.c.l.b16 %v1767
        %v1832 = vunpack.c.l.b16 %v1768
        %v1833 = vunpack.c.l.b16 %v1769
        %v1834 = vunpack.c.l.b16 %v1770
        %v1835 = vunpack.c.l.b16 %v1771
        %v1836 = vunpack.c.l.b16 %v1772
        %v1837 = vunpack.c.l.b16 %v1773
        %v1838 = vunpack.c.l.b16 %v1774
        %v1839 = vunpack.c.l.b16 %v1775
        %v1840 = vunpack.c.l.b16 %v1776
        %v1841 = vunpack.c.l.b16 %v1777
        %v1842 = vunpack.c.l.b16 %v1778
        %v1843 = vunpack.c.l.b16 %v1779
        %v1844 = vunpack.c.l.b16 %v1780
        %v1845 = vunpack.c.l.b16 %v1781
        %v1846 = vunpack.c.l.b16 %v1782
        %v1847 = vunpack.c.l.b16 %v1783
        %v1848 = vpack.c.b16 %v1817, %v1816
        %v1849 = vpack.c.b16 %v1819, %v1818
        %v1850 = vpack.c.b16 %v1821, %v1820
        %v1851 = vpack.c.b16 %v1823, %v1822
        %v1852 = vpack.c.b16 %v1825, %v1824
        %v1853 = vpack.c.b16 %v1827, %v1826
        %v1854 = vpack.c.b16 %v1829, %v1828
        %v1855 = vpack.c.b16 %v1831, %v1830
        %v1856 = vpack.c.b16 %v1833, %v1832
        %v1857 = vpack.c.b16 %v1835, %v1834
        %v1858 = vpack.c.b16 %v1837, %v1836
        %v1859 = vpack.c.b16 %v1839, %v1838
        %v1860 = vpack.c.b16 %v1841, %v1840
        %v1861 = vpack.c.b16 %v1843, %v1842
        %v1862 = vpack.c.b16 %v1845, %v1844
        %v1863 = vpack.c.b16 %v1847, %v1846
        %1880 = vmatprep.subr.bf16.mxu0 0
        %1881 = vmatpush1.bf16.msra.mxu0 %v1855
        %1882 = vmatprep.subr.bf16.mxu0 0
        %1883 = vmatpush1.bf16.msra.mxu0 %v1854
        %1884 = vmatprep.subr.bf16.mxu0 0
        %1885 = vmatpush1.bf16.msra.mxu0 %v1853
        %1886 = vmatprep.subr.bf16.mxu0 0
        %1887 = vmatpush1.bf16.msra.mxu0 %v1852
        %1888 = vmatprep.subr.bf16.mxu0 0
        %1889 = vmatpush1.bf16.msra.mxu0 %v1851
        %1890 = vmatprep.subr.bf16.mxu0 0
        %1891 = vmatpush1.bf16.msra.mxu0 %v1850
        %1892 = vmatprep.subr.bf16.mxu0 0
        %1893 = vmatpush1.bf16.msra.mxu0 %v1849
        %1894 = vmatprep.subr.bf16.mxu0 0
        %1895 = vmatpush1.bf16.msra.mxu0 %v1848
        %1896 = vmatprep.subr.bf16.mxu0 0
        %1897 = vmatpush2.bf16.msra.mxu0 %v1863
        %1898 = vmatprep.subr.bf16.mxu0 0
        %1899 = vmatpush2.bf16.msra.mxu0 %v1862
        %1900 = vmatprep.subr.bf16.mxu0 0
        %1901 = vmatpush2.bf16.msra.mxu0 %v1861
        %1902 = vmatprep.subr.bf16.mxu0 0
        %1903 = vmatpush2.bf16.msra.mxu0 %v1860
        %1904 = vmatprep.subr.bf16.mxu0 0
        %1905 = vmatpush2.bf16.msra.mxu0 %v1859
        %1906 = vmatprep.subr.bf16.mxu0 0
        %1907 = vmatpush2.bf16.msra.mxu0 %v1858
        %1908 = vmatprep.subr.bf16.mxu0 0
        %1909 = vmatpush2.bf16.msra.mxu0 %v1857
        %1910 = vmatprep.subr.bf16.mxu0 0
        %1911 = vmatpush2.bf16.msra.mxu0 %v1856
        %1912 = vmatprep.mubr.bf16.mxu0 %v1751
        %1913 = vmatmul.mubr.bf16.gmra.mxu0 %v1750
        %v1914 = vpop.f32.mrf.mxu0
        %v1915 = vadd.f32 0.0, %v1914
        %v1916 = vpop.f32.mrf.mxu0
        %v1917 = vpop.f32.mrf.mxu0
        %v1918 = vpop.f32.mrf.mxu0
        %1919 = vdwg.mxu0
        %v1920 = vadd.f32 %v1447, %v1915
        %1921 = vst [vmem:[%s538] sm:$0xff] %v1920
        %p1922 = scmp.lt.s32.totalorder %s30, 1
        %s1923 = scalar_select %p1922, %s30, 1
        %s1924 = smul.addr %s1923, 8
        %s1925 = scalar_lea.vmem %s9, %s1924
        // Predicated region
        $region73: #{rlhf_flow_llama_math_rm_forward.2} parent=55 // pred_check
          %p1926 = pneg %p290
        $region74: #{rlhf_flow_llama_math_rm_forward.2} parent=55 // pred_check_branch
          %1928 = sbr.rel (%p1926) target = $region76
        $region75: #{rlhf_flow_llama_math_rm_forward.2} parent=55 // pred_region
          _
        $region76: #{rlhf_flow_llama_math_rm_forward.2} parent=55 // pred_fallthru
          _
      $region56: #{rlhf_flow_llama_math_rm_forward.2} parent=5 // pred_fallthru
        _
      %p1929 = scmp.le.s32.totalorder 2, %s21
      // Predicated region
      $region77: #{rlhf_flow_llama_math_rm_forward.2} parent=5 // pred_check
        %p1930 = pneg %p1929
      $region78: #{rlhf_flow_llama_math_rm_forward.2} parent=5 // pred_check_branch
        %1932 = sbr.rel (%p1930) target = $region80
      $region79: #{rlhf_flow_llama_math_rm_forward.2} parent=5 // pred_region
        %s1933 = ssub.s32 %s21, 2
        // Predicated region
        $region81: #{rlhf_flow_llama_math_rm_forward.2} parent=79 // pred_check
          %p1934 = pneg %p296
        $region82: #{rlhf_flow_llama_math_rm_forward.2} parent=79 // pred_check_branch
          %1936 = sbr.rel (%p1934) target = $region84
        $region83: #{rlhf_flow_llama_math_rm_forward.2} parent=79 // pred_region
          %p1937 = scmp.lt.s32.totalorder %s32, 1
          %s1938 = scalar_select %p1937, %s32, 1
          %s1939 = smul.addr %s1938, 8
          %s1940 = scalar_lea.vmem %s9, %s1939
        $region84: #{rlhf_flow_llama_math_rm_forward.2} parent=79 // pred_fallthru
          _
      $region80: #{rlhf_flow_llama_math_rm_forward.2} parent=5 // pred_fallthru
        _
    $region6: #{rlhf_flow_llama_math_rm_forward.2} parent=1 // loop_footer
      %s25 = sadd.s32 1, %s21
    $region7: #{rlhf_flow_llama_math_rm_forward.2} parent=1 // loop_footer_branch
      %20 = sbr.rel target = $region3
    $region8: #{rlhf_flow_llama_math_rm_forward.2} parent=1 // loop_exit
      _
    %1941 = vsyncpa [#allocation3], 1
    %s1942 = scalar_lea.sflag [#allocation3], 1
    %1943 = vsyncpa %s1942, 1
    %1944 = vsyncpa [#allocation5], 1
    %s1945 = scalar_lea.sflag [#allocation5], 1
    %1946 = vsyncpa %s1945, 1

</llo_original>
